<compile_context>
chip_gen: v6e
topology: v6e:2x2x1
jax: 0.10.0
libtpu: 0.0.40
codegen_flags: <defaults>
</compile_context>

<pallas_src>
import jax
import jax.numpy as jnp
from jax.experimental import pallas as pl
from jax.experimental.pallas import tpu as pltpu


# --------------------------------------------------------------------------------------
# Pallas kernel
# --------------------------------------------------------------------------------------
def bi_lstm_mlp_kernel(
    x_ref,                  # (T*B, 2I)  time-major; lanes [0:I]=x[t], [I:2I]=x[T-1-t]
    h0_ref, c0_ref,         # (B, 2H)    lanes [0:H]=fwd dir, [H:2H]=bwd dir  (layer 0)
    wih_ref,                # (2I, 8H)   block-diag, gate cols [i_f,i_b,f_f,f_b,o_f,o_b,g_f,g_b]
    bih_ref,                # (1, 8H)    (b_ih + b_hh), same column layout
    whh_ref,                # (2H, 8H)   block-diag recurrent weights, same column layout
    w1_ref, b1_ref,         # (2H, H),  (1, H)
    w2_ref, b2_ref,         # (H, 128), (1, 128)
    w3_ref, b3_ref,         # (128, 64),(1, 64)
    w4_ref, b4_ref,         # (64, 16), (1, 16)
    w5_ref, b5_ref,         # (16, 4),  (1, 4)
    w6_ref, b6_ref,         # (4, 1),   (1, 1)
    out_ref,                # (B, 1)
):
    B = h0_ref.shape[0]
    H = h0_ref.shape[1] // 2
    T = x_ref.shape[0] // B

    # ---- Hoisted input projection: all timesteps, BOTH directions, biases folded ----
    # (T*B, 2I) @ (2I, 8H) -> (T*B, 8H); row block t already pairs fwd gates of time t
    # with bwd gates of time T-1-t, so the recurrence below never has to re-index time.
    xg = jnp.dot(x_ref[...], wih_ref[...], preferred_element_type=jnp.float32) + bih_ref[...]

    whh = whh_ref[...]                                    # (2H, 8H) loaded once
    h = h0_ref[...]                                       # (B, 2H) = [h_fwd | h_bwd]
    c = c0_ref[...]                                       # (B, 2H) = [c_fwd | c_bwd]

    # ---- Fused bidirectional recurrence, fully unrolled (T is static and small) ----
    for t in range(T):
        # ONE recurrent matmul per step for both directions: (B, 2H) @ (2H, 8H=256).
        gates = xg[t * B:(t + 1) * B, :] + jnp.dot(h, whh, preferred_element_type=jnp.float32)
        sig = jax.nn.sigmoid(gates[:, 0:6 * H])           # i|f|o lanes of both dirs, one call
        i2 = sig[:, 0:2 * H]
        f2 = sig[:, 2 * H:4 * H]
        o2 = sig[:, 4 * H:6 * H]
        g2 = jnp.tanh(gates[:, 6 * H:8 * H])              # g lanes of both dirs, one call
        c = f2 * c + i2 * g2
        h = o2 * jnp.tanh(c)

    # ---- MLP head; h is already torch.cat([h_n[0], h_n[1]], dim=1) ----
    def linear(v, w_ref, b_ref):
        return jnp.dot(v, w_ref[...], preferred_element_type=jnp.float32) + b_ref[...]

    z = jax.nn.relu(linear(h, w1_ref, b1_ref))
    z = jax.nn.relu(linear(z, w2_ref, b2_ref))
    z = jax.nn.relu(linear(z, w3_ref, b3_ref))
    z = jax.nn.relu(linear(z, w4_ref, b4_ref))
    z = jax.nn.relu(linear(z, w5_ref, b5_ref))
    out_ref[...] = linear(z, w6_ref, b6_ref)              # final Linear(4, 1), no ReLU


# --------------------------------------------------------------------------------------
# Wrapper
# --------------------------------------------------------------------------------------
def bi_lstm_mlp_forward(x_bti, h0, c0, packed_params):
    """x_bti: (B, T, I) batch-first like PyTorch. Returns squeezed (B,) prediction."""
    B, T, I = x_bti.shape
    xt = jnp.transpose(x_bti, (1, 0, 2)).astype(jnp.float32)        # (T, B, I) time-major
    x_comb = jnp.concatenate([xt, xt[::-1]], axis=-1)               # (T, B, 2I)
    x_comb = x_comb.reshape(T * B, 2 * I)
    h2 = jnp.concatenate([h0[0], h0[1]], axis=-1).astype(jnp.float32)   # (B, 2H)
    c2 = jnp.concatenate([c0[0], c0[1]], axis=-1).astype(jnp.float32)   # (B, 2H)
    args = (x_comb, h2, c2, *packed_params)
    out = pl.pallas_call(
        bi_lstm_mlp_kernel,
        out_shape=jax.ShapeDtypeStruct((B, 1), jnp.float32),
        in_specs=[pl.BlockSpec(memory_space=pltpu.MemorySpace.VMEM)] * len(args),
        out_specs=pl.BlockSpec(memory_space=pltpu.MemorySpace.VMEM),
    )(*args)
    return jnp.squeeze(out)   # matches PyTorch .squeeze()


# --------------------------------------------------------------------------------------
# Parameter construction (raw PyTorch layout) + packing for the kernel
# --------------------------------------------------------------------------------------
def init_lstm_direction_raw(key, input_size, hidden_size):
    """One direction of nn.LSTM layer 0 in PyTorch layout / gate order (i, f, g, o)."""
    H = hidden_size
    k = 1.0 / (H ** 0.5)
    k1, k2, k3, k4 = jax.random.split(key, 4)
    w_ih = jax.random.uniform(k1, (4 * H, input_size), jnp.float32, -k, k)
    w_hh = jax.random.uniform(k2, (4 * H, H), jnp.float32, -k, k)
    b_ih = jax.random.uniform(k3, (4 * H,), jnp.float32, -k, k)
    b_hh = jax.random.uniform(k4, (4 * H,), jnp.float32, -k, k)
    return w_ih, w_hh, b_ih, b_hh


def init_linear_raw(key, fan_in, fan_out):
    k = 1.0 / (fan_in ** 0.5)
    k1, k2 = jax.random.split(key)
    w = jax.random.uniform(k1, (fan_out, fan_in), jnp.float32, -k, k)
    b = jax.random.uniform(k2, (fan_out,), jnp.float32, -k, k)
    return w, b


def pack_bidir_lstm(fwd_raw, bwd_raw, I, H):
    """PyTorch gate order (i, f, g, o), two directions -> fused block-diagonal weights
    with gate columns interleaved as [i_f, i_b, f_f, f_b, o_f, o_b, g_f, g_b]."""
    order = (0, 1, 3, 2)                                   # i, f, o, g

    def gate_blocks_T(w):                                  # (4H, in) -> 4 x (in, H)
        w4 = w.reshape(4, H, -1)
        return [w4[k].T for k in order]

    def gate_bias(b_ih, b_hh):                             # fused bias -> 4 x (H,)
        b = (b_ih + b_hh).reshape(4, H)
        return [b[k] for k in order]

    wih_f, whh_f, bih_f, bhh_f = fwd_raw
    wih_b, whh_b, bih_b, bhh_b = bwd_raw

    f_ih, b_ih_blk = gate_blocks_T(wih_f), gate_blocks_T(wih_b)
    f_hh, b_hh_blk = gate_blocks_T(whh_f), gate_blocks_T(whh_b)
    f_bias, b_bias = gate_bias(bih_f, bhh_f), gate_bias(bih_b, bhh_b)

    Zi = jnp.zeros((I, H), jnp.float32)
    Zh = jnp.zeros((H, H), jnp.float32)

    ih_cols, hh_cols, b_cols = [], [], []
    for k in range(4):
        ih_cols.append(jnp.concatenate([f_ih[k], Zi], axis=0))        # fwd-gate column
        ih_cols.append(jnp.concatenate([Zi, b_ih_blk[k]], axis=0))    # bwd-gate column
        hh_cols.append(jnp.concatenate([f_hh[k], Zh], axis=0))
        hh_cols.append(jnp.concatenate([Zh, b_hh_blk[k]], axis=0))
        b_cols.append(f_bias[k])
        b_cols.append(b_bias[k])

    wih_comb = jnp.concatenate(ih_cols, axis=1)            # (2I, 8H)
    whh_comb = jnp.concatenate(hh_cols, axis=1)            # (2H, 8H)
    bias_comb = jnp.concatenate(b_cols, axis=0).reshape(1, 8 * H)
    return wih_comb, bias_comb, whh_comb


def pack_linear(w, b):
    return w.T, b.reshape(1, -1)                           # (in, out), (1, out)


# --------------------------------------------------------------------------------------
# Pure-JAX reference (straight from PyTorch semantics) for a numerical check
# --------------------------------------------------------------------------------------
def _lstm_cell_ref(x_t, h, c, w_ih, w_hh, b_ih, b_hh, H):
    gates = x_t @ w_ih.T + b_ih + h @ w_hh.T + b_hh        # PyTorch gate order (i, f, g, o)
    i = jax.nn.sigmoid(gates[:, 0:H])
    f = jax.nn.sigmoid(gates[:, H:2 * H])
    g = jnp.tanh(gates[:, 2 * H:3 * H])
    o = jax.nn.sigmoid(gates[:, 3 * H:4 * H])
    c_new = f * c + i * g
    return o * jnp.tanh(c_new), c_new


def reference_forward(x, h0, c0, fwd_raw, bwd_raw, mlp_raw, H):
    B, T, _ = x.shape
    h_f, c_f = h0[0], c0[0]
    for t in range(T):
        h_f, c_f = _lstm_cell_ref(x[:, t], h_f, c_f, *fwd_raw, H)
    h_b, c_b = h0[1], c0[1]
    for t in range(T - 1, -1, -1):
        h_b, c_b = _lstm_cell_ref(x[:, t], h_b, c_b, *bwd_raw, H)
    z = jnp.concatenate([h_f, h_b], axis=1)
    for idx, (w, b) in enumerate(mlp_raw):
        z = z @ w.T + b
        if idx < len(mlp_raw) - 1:
            z = jax.nn.relu(z)
    return jnp.squeeze(z)


# --------------------------------------------------------------------------------------
if __name__ == "__main__":
    # Module hyper-params (small, consistent with the forward pass).
    input_size, hidden_size, num_layers, output_size = 8, 32, 1, 1
    batch_size, seq_len = 2, 8
    # TODO(synk): LSTM layers > 0 of a multi-layer stack are dead code for this forward
    # (only h_n[0], h_n[1] are consumed), so only layer 0 is computed (num_layers=1 here).

    key = jax.random.PRNGKey(0)
    kx, kh, kc, kf, kb, *kmlp = jax.random.split(key, 11)

    x = jax.random.normal(kx, (batch_size, seq_len, input_size), jnp.float32)
    # forward() draws random initial states each call; drawn deterministically here.
    h0 = jax.random.normal(kh, (2, batch_size, hidden_size), jnp.float32)
    c0 = jax.random.normal(kc, (2, batch_size, hidden_size), jnp.float32) + 1.0

    fwd_raw = init_lstm_direction_raw(kf, input_size, hidden_size)
    bwd_raw = init_lstm_direction_raw(kb, input_size, hidden_size)

    mlp_dims = [(2 * hidden_size, hidden_size), (hidden_size, 128),
                (128, 64), (64, 16), (16, 4), (4, 1)]
    mlp_raw = [init_linear_raw(kk, fi, fo) for kk, (fi, fo) in zip(kmlp, mlp_dims)]

    # ---- pack for the kernel ----
    wih_comb, bias_comb, whh_comb = pack_bidir_lstm(fwd_raw, bwd_raw, input_size, hidden_size)
    mlp_packed = []
    for w, b in mlp_raw:
        wt, bt = pack_linear(w, b)
        mlp_packed += [wt, bt]
    packed = (wih_comb, bias_comb, whh_comb, *mlp_packed)

    out = bi_lstm_mlp_forward(x, h0, c0, packed)
    out = jax.block_until_ready(out)

    ref = reference_forward(x, h0, c0, fwd_raw, bwd_raw, mlp_raw, hidden_size)
    assert out.shape == (batch_size,)
    assert bool(jnp.allclose(out, ref, rtol=1e-3, atol=1e-3)), (out, ref)
    print("KERNEL_OK")
</pallas_src>

<mosaic_0001>
module attributes {stable_mosaic.version = 11 : i64} {
  func.func @bi_lstm_mlp_kernel(%arg0: memref<16x16xf32, #tpu.memory_space<vmem>>, %arg1: memref<2x64xf32, #tpu.memory_space<vmem>>, %arg2: memref<2x64xf32, #tpu.memory_space<vmem>>, %arg3: memref<16x256xf32, #tpu.memory_space<vmem>>, %arg4: memref<1x256xf32, #tpu.memory_space<vmem>>, %arg5: memref<64x256xf32, #tpu.memory_space<vmem>>, %arg6: memref<64x32xf32, #tpu.memory_space<vmem>>, %arg7: memref<1x32xf32, #tpu.memory_space<vmem>>, %arg8: memref<32x128xf32, #tpu.memory_space<vmem>>, %arg9: memref<1x128xf32, #tpu.memory_space<vmem>>, %arg10: memref<128x64xf32, #tpu.memory_space<vmem>>, %arg11: memref<1x64xf32, #tpu.memory_space<vmem>>, %arg12: memref<64x16xf32, #tpu.memory_space<vmem>>, %arg13: memref<1x16xf32, #tpu.memory_space<vmem>>, %arg14: memref<16x4xf32, #tpu.memory_space<vmem>>, %arg15: memref<1x4xf32, #tpu.memory_space<vmem>>, %arg16: memref<4x1xf32, #tpu.memory_space<vmem>>, %arg17: memref<1x1xf32, #tpu.memory_space<vmem>>, %arg18: memref<2x1xf32, #tpu.memory_space<vmem>>) attributes {dimension_semantics = [], scalar_prefetch = 0 : i64, scratch_operands = 0 : i64, tpu.core_type = #tpu.core_type<tc>} {
    %c0 = arith.constant 0 : index
    %c0_0 = arith.constant 0 : index
    %0 = vector.load %arg0[%c0, %c0_0] : memref<16x16xf32, #tpu.memory_space<vmem>>, vector<16x16xf32>
    %c0_1 = arith.constant 0 : index
    %c0_2 = arith.constant 0 : index
    %1 = vector.load %arg3[%c0_1, %c0_2] : memref<16x256xf32, #tpu.memory_space<vmem>>, vector<16x256xf32>
    %cst = arith.constant dense<0.000000e+00> : vector<16x256xf32>
    %2 = tpu.matmul %0, %1, %cst {dimension_numbers = #tpu.dot_dimension_numbers<[1], [0], [0], [1], [0, 0, 1, 1], [], []>} : vector<16x16xf32>, vector<16x256xf32>, vector<16x256xf32> -> vector<16x256xf32>
    %c0_3 = arith.constant 0 : index
    %c0_4 = arith.constant 0 : index
    %3 = vector.load %arg4[%c0_3, %c0_4] : memref<1x256xf32, #tpu.memory_space<vmem>>, vector<1x256xf32>
    %4 = vector.broadcast %3 : vector<1x256xf32> to vector<16x256xf32>
    %5 = arith.addf %2, %4 : vector<16x256xf32>
    %c0_5 = arith.constant 0 : index
    %c0_6 = arith.constant 0 : index
    %6 = vector.load %arg5[%c0_5, %c0_6] : memref<64x256xf32, #tpu.memory_space<vmem>>, vector<64x256xf32>
    %c0_7 = arith.constant 0 : index
    %c0_8 = arith.constant 0 : index
    %7 = vector.load %arg1[%c0_7, %c0_8] : memref<2x64xf32, #tpu.memory_space<vmem>>, vector<2x64xf32>
    %c0_9 = arith.constant 0 : index
    %c0_10 = arith.constant 0 : index
    %8 = vector.load %arg2[%c0_9, %c0_10] : memref<2x64xf32, #tpu.memory_space<vmem>>, vector<2x64xf32>
    %9 = vector.extract_strided_slice %5 {offsets = [0, 0], sizes = [2, 256], strides = [1, 1]} : vector<16x256xf32> to vector<2x256xf32>
    %cst_11 = arith.constant dense<0.000000e+00> : vector<2x256xf32>
    %10 = tpu.matmul %7, %6, %cst_11 {dimension_numbers = #tpu.dot_dimension_numbers<[1], [0], [0], [1], [0, 0, 1, 1], [], []>} : vector<2x64xf32>, vector<64x256xf32>, vector<2x256xf32> -> vector<2x256xf32>
    %11 = arith.addf %9, %10 : vector<2x256xf32>
    %12 = vector.extract_strided_slice %11 {offsets = [0, 0], sizes = [2, 192], strides = [1, 1]} : vector<2x256xf32> to vector<2x192xf32>
    %13 = arith.negf %12 : vector<2x192xf32>
    %14 = math.exp %13 : vector<2x192xf32>
    %cst_12 = arith.constant 1.000000e+00 : f32
    %15 = vector.broadcast %cst_12 : f32 to vector<2x192xf32>
    %16 = arith.addf %15, %14 : vector<2x192xf32>
    %17 = arith.divf %15, %16 : vector<2x192xf32>
    %18 = vector.extract_strided_slice %17 {offsets = [0, 0], sizes = [2, 64], strides = [1, 1]} : vector<2x192xf32> to vector<2x64xf32>
    %19 = vector.extract_strided_slice %17 {offsets = [0, 64], sizes = [2, 64], strides = [1, 1]} : vector<2x192xf32> to vector<2x64xf32>
    %20 = vector.extract_strided_slice %17 {offsets = [0, 128], sizes = [2, 64], strides = [1, 1]} : vector<2x192xf32> to vector<2x64xf32>
    %21 = vector.extract_strided_slice %11 {offsets = [0, 192], sizes = [2, 64], strides = [1, 1]} : vector<2x256xf32> to vector<2x64xf32>
    %22 = math.tanh %21 : vector<2x64xf32>
    %23 = arith.mulf %19, %8 : vector<2x64xf32>
    %24 = arith.mulf %18, %22 : vector<2x64xf32>
    %25 = arith.addf %23, %24 : vector<2x64xf32>
    %26 = math.tanh %25 : vector<2x64xf32>
    %27 = arith.mulf %20, %26 : vector<2x64xf32>
    %28 = vector.extract_strided_slice %5 {offsets = [2, 0], sizes = [2, 256], strides = [1, 1]} : vector<16x256xf32> to vector<2x256xf32>
    %cst_13 = arith.constant dense<0.000000e+00> : vector<2x256xf32>
    %29 = tpu.matmul %27, %6, %cst_13 {dimension_numbers = #tpu.dot_dimension_numbers<[1], [0], [0], [1], [0, 0, 1, 1], [], []>} : vector<2x64xf32>, vector<64x256xf32>, vector<2x256xf32> -> vector<2x256xf32>
    %30 = arith.addf %28, %29 : vector<2x256xf32>
    %31 = vector.extract_strided_slice %30 {offsets = [0, 0], sizes = [2, 192], strides = [1, 1]} : vector<2x256xf32> to vector<2x192xf32>
    %32 = arith.negf %31 : vector<2x192xf32>
    %33 = math.exp %32 : vector<2x192xf32>
    %cst_14 = arith.constant 1.000000e+00 : f32
    %34 = vector.broadcast %cst_14 : f32 to vector<2x192xf32>
    %35 = arith.addf %34, %33 : vector<2x192xf32>
    %36 = arith.divf %34, %35 : vector<2x192xf32>
    %37 = vector.extract_strided_slice %36 {offsets = [0, 0], sizes = [2, 64], strides = [1, 1]} : vector<2x192xf32> to vector<2x64xf32>
    %38 = vector.extract_strided_slice %36 {offsets = [0, 64], sizes = [2, 64], strides = [1, 1]} : vector<2x192xf32> to vector<2x64xf32>
    %39 = vector.extract_strided_slice %36 {offsets = [0, 128], sizes = [2, 64], strides = [1, 1]} : vector<2x192xf32> to vector<2x64xf32>
    %40 = vector.extract_strided_slice %30 {offsets = [0, 192], sizes = [2, 64], strides = [1, 1]} : vector<2x256xf32> to vector<2x64xf32>
    %41 = math.tanh %40 : vector<2x64xf32>
    %42 = arith.mulf %38, %25 : vector<2x64xf32>
    %43 = arith.mulf %37, %41 : vector<2x64xf32>
    %44 = arith.addf %42, %43 : vector<2x64xf32>
    %45 = math.tanh %44 : vector<2x64xf32>
    %46 = arith.mulf %39, %45 : vector<2x64xf32>
    %47 = vector.extract_strided_slice %5 {offsets = [4, 0], sizes = [2, 256], strides = [1, 1]} : vector<16x256xf32> to vector<2x256xf32>
    %cst_15 = arith.constant dense<0.000000e+00> : vector<2x256xf32>
    %48 = tpu.matmul %46, %6, %cst_15 {dimension_numbers = #tpu.dot_dimension_numbers<[1], [0], [0], [1], [0, 0, 1, 1], [], []>} : vector<2x64xf32>, vector<64x256xf32>, vector<2x256xf32> -> vector<2x256xf32>
    %49 = arith.addf %47, %48 : vector<2x256xf32>
    %50 = vector.extract_strided_slice %49 {offsets = [0, 0], sizes = [2, 192], strides = [1, 1]} : vector<2x256xf32> to vector<2x192xf32>
    %51 = arith.negf %50 : vector<2x192xf32>
    %52 = math.exp %51 : vector<2x192xf32>
    %cst_16 = arith.constant 1.000000e+00 : f32
    %53 = vector.broadcast %cst_16 : f32 to vector<2x192xf32>
    %54 = arith.addf %53, %52 : vector<2x192xf32>
    %55 = arith.divf %53, %54 : vector<2x192xf32>
    %56 = vector.extract_strided_slice %55 {offsets = [0, 0], sizes = [2, 64], strides = [1, 1]} : vector<2x192xf32> to vector<2x64xf32>
    %57 = vector.extract_strided_slice %55 {offsets = [0, 64], sizes = [2, 64], strides = [1, 1]} : vector<2x192xf32> to vector<2x64xf32>
    %58 = vector.extract_strided_slice %55 {offsets = [0, 128], sizes = [2, 64], strides = [1, 1]} : vector<2x192xf32> to vector<2x64xf32>
    %59 = vector.extract_strided_slice %49 {offsets = [0, 192], sizes = [2, 64], strides = [1, 1]} : vector<2x256xf32> to vector<2x64xf32>
    %60 = math.tanh %59 : vector<2x64xf32>
    %61 = arith.mulf %57, %44 : vector<2x64xf32>
    %62 = arith.mulf %56, %60 : vector<2x64xf32>
    %63 = arith.addf %61, %62 : vector<2x64xf32>
    %64 = math.tanh %63 : vector<2x64xf32>
    %65 = arith.mulf %58, %64 : vector<2x64xf32>
    %66 = vector.extract_strided_slice %5 {offsets = [6, 0], sizes = [2, 256], strides = [1, 1]} : vector<16x256xf32> to vector<2x256xf32>
    %cst_17 = arith.constant dense<0.000000e+00> : vector<2x256xf32>
    %67 = tpu.matmul %65, %6, %cst_17 {dimension_numbers = #tpu.dot_dimension_numbers<[1], [0], [0], [1], [0, 0, 1, 1], [], []>} : vector<2x64xf32>, vector<64x256xf32>, vector<2x256xf32> -> vector<2x256xf32>
    %68 = arith.addf %66, %67 : vector<2x256xf32>
    %69 = vector.extract_strided_slice %68 {offsets = [0, 0], sizes = [2, 192], strides = [1, 1]} : vector<2x256xf32> to vector<2x192xf32>
    %70 = arith.negf %69 : vector<2x192xf32>
    %71 = math.exp %70 : vector<2x192xf32>
    %cst_18 = arith.constant 1.000000e+00 : f32
    %72 = vector.broadcast %cst_18 : f32 to vector<2x192xf32>
    %73 = arith.addf %72, %71 : vector<2x192xf32>
    %74 = arith.divf %72, %73 : vector<2x192xf32>
    %75 = vector.extract_strided_slice %74 {offsets = [0, 0], sizes = [2, 64], strides = [1, 1]} : vector<2x192xf32> to vector<2x64xf32>
    %76 = vector.extract_strided_slice %74 {offsets = [0, 64], sizes = [2, 64], strides = [1, 1]} : vector<2x192xf32> to vector<2x64xf32>
    %77 = vector.extract_strided_slice %74 {offsets = [0, 128], sizes = [2, 64], strides = [1, 1]} : vector<2x192xf32> to vector<2x64xf32>
    %78 = vector.extract_strided_slice %68 {offsets = [0, 192], sizes = [2, 64], strides = [1, 1]} : vector<2x256xf32> to vector<2x64xf32>
    %79 = math.tanh %78 : vector<2x64xf32>
    %80 = arith.mulf %76, %63 : vector<2x64xf32>
    %81 = arith.mulf %75, %79 : vector<2x64xf32>
    %82 = arith.addf %80, %81 : vector<2x64xf32>
    %83 = math.tanh %82 : vector<2x64xf32>
    %84 = arith.mulf %77, %83 : vector<2x64xf32>
    %85 = vector.extract_strided_slice %5 {offsets = [8, 0], sizes = [2, 256], strides = [1, 1]} : vector<16x256xf32> to vector<2x256xf32>
    %cst_19 = arith.constant dense<0.000000e+00> : vector<2x256xf32>
    %86 = tpu.matmul %84, %6, %cst_19 {dimension_numbers = #tpu.dot_dimension_numbers<[1], [0], [0], [1], [0, 0, 1, 1], [], []>} : vector<2x64xf32>, vector<64x256xf32>, vector<2x256xf32> -> vector<2x256xf32>
    %87 = arith.addf %85, %86 : vector<2x256xf32>
    %88 = vector.extract_strided_slice %87 {offsets = [0, 0], sizes = [2, 192], strides = [1, 1]} : vector<2x256xf32> to vector<2x192xf32>
    %89 = arith.negf %88 : vector<2x192xf32>
    %90 = math.exp %89 : vector<2x192xf32>
    %cst_20 = arith.constant 1.000000e+00 : f32
    %91 = vector.broadcast %cst_20 : f32 to vector<2x192xf32>
    %92 = arith.addf %91, %90 : vector<2x192xf32>
    %93 = arith.divf %91, %92 : vector<2x192xf32>
    %94 = vector.extract_strided_slice %93 {offsets = [0, 0], sizes = [2, 64], strides = [1, 1]} : vector<2x192xf32> to vector<2x64xf32>
    %95 = vector.extract_strided_slice %93 {offsets = [0, 64], sizes = [2, 64], strides = [1, 1]} : vector<2x192xf32> to vector<2x64xf32>
    %96 = vector.extract_strided_slice %93 {offsets = [0, 128], sizes = [2, 64], strides = [1, 1]} : vector<2x192xf32> to vector<2x64xf32>
    %97 = vector.extract_strided_slice %87 {offsets = [0, 192], sizes = [2, 64], strides = [1, 1]} : vector<2x256xf32> to vector<2x64xf32>
    %98 = math.tanh %97 : vector<2x64xf32>
    %99 = arith.mulf %95, %82 : vector<2x64xf32>
    %100 = arith.mulf %94, %98 : vector<2x64xf32>
    %101 = arith.addf %99, %100 : vector<2x64xf32>
    %102 = math.tanh %101 : vector<2x64xf32>
    %103 = arith.mulf %96, %102 : vector<2x64xf32>
    %104 = vector.extract_strided_slice %5 {offsets = [10, 0], sizes = [2, 256], strides = [1, 1]} : vector<16x256xf32> to vector<2x256xf32>
    %cst_21 = arith.constant dense<0.000000e+00> : vector<2x256xf32>
    %105 = tpu.matmul %103, %6, %cst_21 {dimension_numbers = #tpu.dot_dimension_numbers<[1], [0], [0], [1], [0, 0, 1, 1], [], []>} : vector<2x64xf32>, vector<64x256xf32>, vector<2x256xf32> -> vector<2x256xf32>
    %106 = arith.addf %104, %105 : vector<2x256xf32>
    %107 = vector.extract_strided_slice %106 {offsets = [0, 0], sizes = [2, 192], strides = [1, 1]} : vector<2x256xf32> to vector<2x192xf32>
    %108 = arith.negf %107 : vector<2x192xf32>
    %109 = math.exp %108 : vector<2x192xf32>
    %cst_22 = arith.constant 1.000000e+00 : f32
    %110 = vector.broadcast %cst_22 : f32 to vector<2x192xf32>
    %111 = arith.addf %110, %109 : vector<2x192xf32>
    %112 = arith.divf %110, %111 : vector<2x192xf32>
    %113 = vector.extract_strided_slice %112 {offsets = [0, 0], sizes = [2, 64], strides = [1, 1]} : vector<2x192xf32> to vector<2x64xf32>
    %114 = vector.extract_strided_slice %112 {offsets = [0, 64], sizes = [2, 64], strides = [1, 1]} : vector<2x192xf32> to vector<2x64xf32>
    %115 = vector.extract_strided_slice %112 {offsets = [0, 128], sizes = [2, 64], strides = [1, 1]} : vector<2x192xf32> to vector<2x64xf32>
    %116 = vector.extract_strided_slice %106 {offsets = [0, 192], sizes = [2, 64], strides = [1, 1]} : vector<2x256xf32> to vector<2x64xf32>
    %117 = math.tanh %116 : vector<2x64xf32>
    %118 = arith.mulf %114, %101 : vector<2x64xf32>
    %119 = arith.mulf %113, %117 : vector<2x64xf32>
    %120 = arith.addf %118, %119 : vector<2x64xf32>
    %121 = math.tanh %120 : vector<2x64xf32>
    %122 = arith.mulf %115, %121 : vector<2x64xf32>
    %123 = vector.extract_strided_slice %5 {offsets = [12, 0], sizes = [2, 256], strides = [1, 1]} : vector<16x256xf32> to vector<2x256xf32>
    %cst_23 = arith.constant dense<0.000000e+00> : vector<2x256xf32>
    %124 = tpu.matmul %122, %6, %cst_23 {dimension_numbers = #tpu.dot_dimension_numbers<[1], [0], [0], [1], [0, 0, 1, 1], [], []>} : vector<2x64xf32>, vector<64x256xf32>, vector<2x256xf32> -> vector<2x256xf32>
    %125 = arith.addf %123, %124 : vector<2x256xf32>
    %126 = vector.extract_strided_slice %125 {offsets = [0, 0], sizes = [2, 192], strides = [1, 1]} : vector<2x256xf32> to vector<2x192xf32>
    %127 = arith.negf %126 : vector<2x192xf32>
    %128 = math.exp %127 : vector<2x192xf32>
    %cst_24 = arith.constant 1.000000e+00 : f32
    %129 = vector.broadcast %cst_24 : f32 to vector<2x192xf32>
    %130 = arith.addf %129, %128 : vector<2x192xf32>
    %131 = arith.divf %129, %130 : vector<2x192xf32>
    %132 = vector.extract_strided_slice %131 {offsets = [0, 0], sizes = [2, 64], strides = [1, 1]} : vector<2x192xf32> to vector<2x64xf32>
    %133 = vector.extract_strided_slice %131 {offsets = [0, 64], sizes = [2, 64], strides = [1, 1]} : vector<2x192xf32> to vector<2x64xf32>
    %134 = vector.extract_strided_slice %131 {offsets = [0, 128], sizes = [2, 64], strides = [1, 1]} : vector<2x192xf32> to vector<2x64xf32>
    %135 = vector.extract_strided_slice %125 {offsets = [0, 192], sizes = [2, 64], strides = [1, 1]} : vector<2x256xf32> to vector<2x64xf32>
    %136 = math.tanh %135 : vector<2x64xf32>
    %137 = arith.mulf %133, %120 : vector<2x64xf32>
    %138 = arith.mulf %132, %136 : vector<2x64xf32>
    %139 = arith.addf %137, %138 : vector<2x64xf32>
    %140 = math.tanh %139 : vector<2x64xf32>
    %141 = arith.mulf %134, %140 : vector<2x64xf32>
    %142 = vector.extract_strided_slice %5 {offsets = [14, 0], sizes = [2, 256], strides = [1, 1]} : vector<16x256xf32> to vector<2x256xf32>
    %cst_25 = arith.constant dense<0.000000e+00> : vector<2x256xf32>
    %143 = tpu.matmul %141, %6, %cst_25 {dimension_numbers = #tpu.dot_dimension_numbers<[1], [0], [0], [1], [0, 0, 1, 1], [], []>} : vector<2x64xf32>, vector<64x256xf32>, vector<2x256xf32> -> vector<2x256xf32>
    %144 = arith.addf %142, %143 : vector<2x256xf32>
    %145 = vector.extract_strided_slice %144 {offsets = [0, 0], sizes = [2, 192], strides = [1, 1]} : vector<2x256xf32> to vector<2x192xf32>
    %146 = arith.negf %145 : vector<2x192xf32>
    %147 = math.exp %146 : vector<2x192xf32>
    %cst_26 = arith.constant 1.000000e+00 : f32
    %148 = vector.broadcast %cst_26 : f32 to vector<2x192xf32>
    %149 = arith.addf %148, %147 : vector<2x192xf32>
    %150 = arith.divf %148, %149 : vector<2x192xf32>
    %151 = vector.extract_strided_slice %150 {offsets = [0, 0], sizes = [2, 64], strides = [1, 1]} : vector<2x192xf32> to vector<2x64xf32>
    %152 = vector.extract_strided_slice %150 {offsets = [0, 64], sizes = [2, 64], strides = [1, 1]} : vector<2x192xf32> to vector<2x64xf32>
    %153 = vector.extract_strided_slice %150 {offsets = [0, 128], sizes = [2, 64], strides = [1, 1]} : vector<2x192xf32> to vector<2x64xf32>
    %154 = vector.extract_strided_slice %144 {offsets = [0, 192], sizes = [2, 64], strides = [1, 1]} : vector<2x256xf32> to vector<2x64xf32>
    %155 = math.tanh %154 : vector<2x64xf32>
    %156 = arith.mulf %152, %139 : vector<2x64xf32>
    %157 = arith.mulf %151, %155 : vector<2x64xf32>
    %158 = arith.addf %156, %157 : vector<2x64xf32>
    %159 = math.tanh %158 : vector<2x64xf32>
    %160 = arith.mulf %153, %159 : vector<2x64xf32>
    %c0_27 = arith.constant 0 : index
    %c0_28 = arith.constant 0 : index
    %161 = vector.load %arg6[%c0_27, %c0_28] : memref<64x32xf32, #tpu.memory_space<vmem>>, vector<64x32xf32>
    %cst_29 = arith.constant dense<0.000000e+00> : vector<2x32xf32>
    %162 = tpu.matmul %160, %161, %cst_29 {dimension_numbers = #tpu.dot_dimension_numbers<[1], [0], [0], [1], [0, 0, 1, 1], [], []>} : vector<2x64xf32>, vector<64x32xf32>, vector<2x32xf32> -> vector<2x32xf32>
    %c0_30 = arith.constant 0 : index
    %c0_31 = arith.constant 0 : index
    %163 = vector.load %arg7[%c0_30, %c0_31] : memref<1x32xf32, #tpu.memory_space<vmem>>, vector<1x32xf32>
    %164 = vector.broadcast %163 : vector<1x32xf32> to vector<2x32xf32>
    %165 = arith.addf %162, %164 : vector<2x32xf32>
    %cst_32 = arith.constant 0.000000e+00 : f32
    %166 = vector.broadcast %cst_32 : f32 to vector<2x32xf32>
    %167 = arith.maximumf %165, %166 : vector<2x32xf32>
    %c0_33 = arith.constant 0 : index
    %c0_34 = arith.constant 0 : index
    %168 = vector.load %arg8[%c0_33, %c0_34] : memref<32x128xf32, #tpu.memory_space<vmem>>, vector<32x128xf32>
    %cst_35 = arith.constant dense<0.000000e+00> : vector<2x128xf32>
    %169 = tpu.matmul %167, %168, %cst_35 {dimension_numbers = #tpu.dot_dimension_numbers<[1], [0], [0], [1], [0, 0, 1, 1], [], []>} : vector<2x32xf32>, vector<32x128xf32>, vector<2x128xf32> -> vector<2x128xf32>
    %c0_36 = arith.constant 0 : index
    %c0_37 = arith.constant 0 : index
    %170 = vector.load %arg9[%c0_36, %c0_37] : memref<1x128xf32, #tpu.memory_space<vmem>>, vector<1x128xf32>
    %171 = vector.broadcast %170 : vector<1x128xf32> to vector<2x128xf32>
    %172 = arith.addf %169, %171 : vector<2x128xf32>
    %cst_38 = arith.constant 0.000000e+00 : f32
    %173 = vector.broadcast %cst_38 : f32 to vector<2x128xf32>
    %174 = arith.maximumf %172, %173 : vector<2x128xf32>
    %c0_39 = arith.constant 0 : index
    %c0_40 = arith.constant 0 : index
    %175 = vector.load %arg10[%c0_39, %c0_40] : memref<128x64xf32, #tpu.memory_space<vmem>>, vector<128x64xf32>
    %cst_41 = arith.constant dense<0.000000e+00> : vector<2x64xf32>
    %176 = tpu.matmul %174, %175, %cst_41 {dimension_numbers = #tpu.dot_dimension_numbers<[1], [0], [0], [1], [0, 0, 1, 1], [], []>} : vector<2x128xf32>, vector<128x64xf32>, vector<2x64xf32> -> vector<2x64xf32>
    %c0_42 = arith.constant 0 : index
    %c0_43 = arith.constant 0 : index
    %177 = vector.load %arg11[%c0_42, %c0_43] : memref<1x64xf32, #tpu.memory_space<vmem>>, vector<1x64xf32>
    %178 = vector.broadcast %177 : vector<1x64xf32> to vector<2x64xf32>
    %179 = arith.addf %176, %178 : vector<2x64xf32>
    %cst_44 = arith.constant 0.000000e+00 : f32
    %180 = vector.broadcast %cst_44 : f32 to vector<2x64xf32>
    %181 = arith.maximumf %179, %180 : vector<2x64xf32>
    %c0_45 = arith.constant 0 : index
    %c0_46 = arith.constant 0 : index
    %182 = vector.load %arg12[%c0_45, %c0_46] : memref<64x16xf32, #tpu.memory_space<vmem>>, vector<64x16xf32>
    %cst_47 = arith.constant dense<0.000000e+00> : vector<2x16xf32>
    %183 = tpu.matmul %181, %182, %cst_47 {dimension_numbers = #tpu.dot_dimension_numbers<[1], [0], [0], [1], [0, 0, 1, 1], [], []>} : vector<2x64xf32>, vector<64x16xf32>, vector<2x16xf32> -> vector<2x16xf32>
    %c0_48 = arith.constant 0 : index
    %c0_49 = arith.constant 0 : index
    %184 = vector.load %arg13[%c0_48, %c0_49] : memref<1x16xf32, #tpu.memory_space<vmem>>, vector<1x16xf32>
    %185 = vector.broadcast %184 : vector<1x16xf32> to vector<2x16xf32>
    %186 = arith.addf %183, %185 : vector<2x16xf32>
    %cst_50 = arith.constant 0.000000e+00 : f32
    %187 = vector.broadcast %cst_50 : f32 to vector<2x16xf32>
    %188 = arith.maximumf %186, %187 : vector<2x16xf32>
    %c0_51 = arith.constant 0 : index
    %c0_52 = arith.constant 0 : index
    %189 = vector.load %arg14[%c0_51, %c0_52] : memref<16x4xf32, #tpu.memory_space<vmem>>, vector<16x4xf32>
    %cst_53 = arith.constant dense<0.000000e+00> : vector<2x4xf32>
    %190 = tpu.matmul %188, %189, %cst_53 {dimension_numbers = #tpu.dot_dimension_numbers<[1], [0], [0], [1], [0, 0, 1, 1], [], []>} : vector<2x16xf32>, vector<16x4xf32>, vector<2x4xf32> -> vector<2x4xf32>
    %c0_54 = arith.constant 0 : index
    %c0_55 = arith.constant 0 : index
    %191 = vector.load %arg15[%c0_54, %c0_55] : memref<1x4xf32, #tpu.memory_space<vmem>>, vector<1x4xf32>
    %192 = vector.broadcast %191 : vector<1x4xf32> to vector<2x4xf32>
    %193 = arith.addf %190, %192 : vector<2x4xf32>
    %cst_56 = arith.constant 0.000000e+00 : f32
    %194 = vector.broadcast %cst_56 : f32 to vector<2x4xf32>
    %195 = arith.maximumf %193, %194 : vector<2x4xf32>
    %c0_57 = arith.constant 0 : index
    %c0_58 = arith.constant 0 : index
    %196 = vector.load %arg16[%c0_57, %c0_58] : memref<4x1xf32, #tpu.memory_space<vmem>>, vector<4x1xf32>
    %cst_59 = arith.constant dense<0.000000e+00> : vector<2x1xf32>
    %197 = tpu.matmul %195, %196, %cst_59 {dimension_numbers = #tpu.dot_dimension_numbers<[1], [0], [0], [1], [0, 0, 1, 1], [], []>} : vector<2x4xf32>, vector<4x1xf32>, vector<2x1xf32> -> vector<2x1xf32>
    %c0_60 = arith.constant 0 : index
    %c0_61 = arith.constant 0 : index
    %198 = vector.load %arg17[%c0_60, %c0_61] : memref<1x1xf32, #tpu.memory_space<vmem>>, vector<1x1xf32>
    %199 = vector.broadcast %198 : vector<1x1xf32> to vector<2x1xf32>
    %200 = arith.addf %197, %199 : vector<2x1xf32>
    %c0_62 = arith.constant 0 : index
    %c0_63 = arith.constant 0 : index
    %201 = vector.load %arg18[%c0_62, %c0_63] : memref<2x1xf32, #tpu.memory_space<vmem>>, vector<2x1xf32>
    tpu.vector_store %arg18[%c0_62, %c0_63], %200 {strides = array<i32>} : memref<2x1xf32, #tpu.memory_space<vmem>>, vector<2x1xf32>,
    return
  }
}

</mosaic_0001>

<llo_original>
// kernel: tpu_custom_call.1
$region0: #{tpu_custom_call.1}
  #allocation0 [shape = 'u32[]', space=smem, size = 0x4, offset = 0x4, fixed_abs, tag = 'smem constant byte address 0x4 - core index']
  #allocation1 [shape = 'u32[144,128]{1,0:T(1,128)}', space=vmem, size = 0x12000, scoped, tag = 'internal scratch']
  #allocation2 [shape = 'f32[1,1]{1,0:T(1,128)S(1)}', space=vmem, size = 0x200, scoped, tag = 'scoped memory for tpu_custom_call.1']
  %s0 = inlined_call_operand.vmem [shape: f32[16,16], index: 0, kind: input, shape index: {}]
  %s1 = inlined_call_operand.vmem [shape: f32[2,64], index: 1, kind: input, shape index: {}]
  %s2 = inlined_call_operand.vmem [shape: f32[2,64], index: 2, kind: input, shape index: {}]
  %s3 = inlined_call_operand.vmem [shape: f32[16,256], index: 3, kind: input, shape index: {}]
  %s4 = inlined_call_operand.vmem [shape: f32[1,256], index: 4, kind: input, shape index: {}]
  %s5 = inlined_call_operand.vmem [shape: f32[64,256], index: 5, kind: input, shape index: {}]
  %s6 = inlined_call_operand.vmem [shape: f32[64,32], index: 6, kind: input, shape index: {}]
  %s7 = inlined_call_operand.vmem [shape: f32[1,32], index: 7, kind: input, shape index: {}]
  %s8 = inlined_call_operand.vmem [shape: f32[32,128], index: 8, kind: input, shape index: {}]
  %s9 = inlined_call_operand.vmem [shape: f32[1,128], index: 9, kind: input, shape index: {}]
  %s10 = inlined_call_operand.vmem [shape: f32[128,64], index: 10, kind: input, shape index: {}]
  %s11 = inlined_call_operand.vmem [shape: f32[1,64], index: 11, kind: input, shape index: {}]
  %s12 = inlined_call_operand.vmem [shape: f32[64,16], index: 12, kind: input, shape index: {}]
  %s13 = inlined_call_operand.vmem [shape: f32[1,16], index: 13, kind: input, shape index: {}]
  %s14 = inlined_call_operand.vmem [shape: f32[16,4], index: 14, kind: input, shape index: {}]
  %s15 = inlined_call_operand.vmem [shape: f32[1,4], index: 15, kind: input, shape index: {}]
  %s16 = inlined_call_operand.vmem [shape: f32[4,1], index: 16, kind: input, shape index: {}]
  %s17 = inlined_call_operand.<no memory space> [shape: f32[1,1], index: 17, kind: input, shape index: {}]
  %s18 = inlined_call_operand.vmem [shape: f32[2,1], index: 18, kind: output, shape index: {}]
  %s19 = sld [smem:[#allocation0]]
  $region82: #{tpu_custom_call.1} parent=0
    _
  %s21 = ssub.s32 1, %s19
  %s22 = scalar_select 0, %s21, %s19
  %v23 = vstv %s17
  %24 = vst [vmem:[#allocation2] sm:$0x1] %v23
  // Predicated region
  $region2: #{tpu_custom_call.1} parent=0 // pred_check
    _
  $region3: #{tpu_custom_call.1} parent=0 // pred_check_branch
    %26 = sbr.rel (0) target = $region5
  $region4: #{tpu_custom_call.1} parent=0 // pred_region
    _
  $region5: #{tpu_custom_call.1} parent=0 // pred_fallthru
    _
  // Predicated region
  $region6: #{tpu_custom_call.1} parent=0 // pred_check
    _
  $region7: #{tpu_custom_call.1} parent=0 // pred_check_branch
    %28 = sbr.rel (0) target = $region9
  $region8: #{tpu_custom_call.1} parent=0 // pred_region
    _
  $region9: #{tpu_custom_call.1} parent=0 // pred_fallthru
    _
  // Predicated region
  $region10: #{tpu_custom_call.1} parent=0 // pred_check
    _
  $region11: #{tpu_custom_call.1} parent=0 // pred_check_branch
    %30 = sbr.rel (0) target = $region13
  $region12: #{tpu_custom_call.1} parent=0 // pred_region
    _
  $region13: #{tpu_custom_call.1} parent=0 // pred_fallthru
    _
  // Predicated region
  $region14: #{tpu_custom_call.1} parent=0 // pred_check
    _
  $region15: #{tpu_custom_call.1} parent=0 // pred_check_branch
    %32 = sbr.rel (0) target = $region17
  $region16: #{tpu_custom_call.1} parent=0 // pred_region
    _
  $region17: #{tpu_custom_call.1} parent=0 // pred_fallthru
    _
  // Predicated region
  $region18: #{tpu_custom_call.1} parent=0 // pred_check
    _
  $region19: #{tpu_custom_call.1} parent=0 // pred_check_branch
    %34 = sbr.rel (0) target = $region21
  $region20: #{tpu_custom_call.1} parent=0 // pred_region
    _
  $region21: #{tpu_custom_call.1} parent=0 // pred_fallthru
    _
  // Predicated region
  $region22: #{tpu_custom_call.1} parent=0 // pred_check
    _
  $region23: #{tpu_custom_call.1} parent=0 // pred_check_branch
    %36 = sbr.rel (0) target = $region25
  $region24: #{tpu_custom_call.1} parent=0 // pred_region
    _
  $region25: #{tpu_custom_call.1} parent=0 // pred_fallthru
    _
  // Predicated region
  $region26: #{tpu_custom_call.1} parent=0 // pred_check
    _
  $region27: #{tpu_custom_call.1} parent=0 // pred_check_branch
    %38 = sbr.rel (0) target = $region29
  $region28: #{tpu_custom_call.1} parent=0 // pred_region
    _
  $region29: #{tpu_custom_call.1} parent=0 // pred_fallthru
    _
  // Predicated region
  $region30: #{tpu_custom_call.1} parent=0 // pred_check
    _
  $region31: #{tpu_custom_call.1} parent=0 // pred_check_branch
    %40 = sbr.rel (0) target = $region33
  $region32: #{tpu_custom_call.1} parent=0 // pred_region
    _
  $region33: #{tpu_custom_call.1} parent=0 // pred_fallthru
    _
  // Predicated region
  $region34: #{tpu_custom_call.1} parent=0 // pred_check
    _
  $region35: #{tpu_custom_call.1} parent=0 // pred_check_branch
    %42 = sbr.rel (0) target = $region37
  $region36: #{tpu_custom_call.1} parent=0 // pred_region
    _
  $region37: #{tpu_custom_call.1} parent=0 // pred_fallthru
    _
  // Predicated region
  $region38: #{tpu_custom_call.1} parent=0 // pred_check
    _
  $region39: #{tpu_custom_call.1} parent=0 // pred_check_branch
    %44 = sbr.rel (0) target = $region41
  $region40: #{tpu_custom_call.1} parent=0 // pred_region
    _
  $region41: #{tpu_custom_call.1} parent=0 // pred_fallthru
    _
  // Predicated region
  $region42: #{tpu_custom_call.1} parent=0 // pred_check
    _
  $region43: #{tpu_custom_call.1} parent=0 // pred_check_branch
    %46 = sbr.rel (0) target = $region45
  $region44: #{tpu_custom_call.1} parent=0 // pred_region
    _
  $region45: #{tpu_custom_call.1} parent=0 // pred_fallthru
    _
  // Predicated region
  $region46: #{tpu_custom_call.1} parent=0 // pred_check
    _
  $region47: #{tpu_custom_call.1} parent=0 // pred_check_branch
    %48 = sbr.rel (0) target = $region49
  $region48: #{tpu_custom_call.1} parent=0 // pred_region
    _
  $region49: #{tpu_custom_call.1} parent=0 // pred_fallthru
    _
  // Predicated region
  $region50: #{tpu_custom_call.1} parent=0 // pred_check
    _
  $region51: #{tpu_custom_call.1} parent=0 // pred_check_branch
    %50 = sbr.rel (0) target = $region53
  $region52: #{tpu_custom_call.1} parent=0 // pred_region
    _
  $region53: #{tpu_custom_call.1} parent=0 // pred_fallthru
    _
  // Predicated region
  $region54: #{tpu_custom_call.1} parent=0 // pred_check
    _
  $region55: #{tpu_custom_call.1} parent=0 // pred_check_branch
    %52 = sbr.rel (0) target = $region57
  $region56: #{tpu_custom_call.1} parent=0 // pred_region
    _
  $region57: #{tpu_custom_call.1} parent=0 // pred_fallthru
    _
  // Predicated region
  $region58: #{tpu_custom_call.1} parent=0 // pred_check
    _
  $region59: #{tpu_custom_call.1} parent=0 // pred_check_branch
    %54 = sbr.rel (0) target = $region61
  $region60: #{tpu_custom_call.1} parent=0 // pred_region
    _
  $region61: #{tpu_custom_call.1} parent=0 // pred_fallthru
    _
  // Predicated region
  $region62: #{tpu_custom_call.1} parent=0 // pred_check
    _
  $region63: #{tpu_custom_call.1} parent=0 // pred_check_branch
    %56 = sbr.rel (0) target = $region65
  $region64: #{tpu_custom_call.1} parent=0 // pred_region
    _
  $region65: #{tpu_custom_call.1} parent=0 // pred_fallthru
    _
  // Predicated region
  $region66: #{tpu_custom_call.1} parent=0 // pred_check
    _
  $region67: #{tpu_custom_call.1} parent=0 // pred_check_branch
    %58 = sbr.rel (0) target = $region69
  $region68: #{tpu_custom_call.1} parent=0 // pred_region
    _
  $region69: #{tpu_custom_call.1} parent=0 // pred_fallthru
    _
  // Predicated region
  $region70: #{tpu_custom_call.1} parent=0 // pred_check
    _
  $region71: #{tpu_custom_call.1} parent=0 // pred_check_branch
    %60 = sbr.rel (0) target = $region73
  $region72: #{tpu_custom_call.1} parent=0 // pred_region
    _
  $region73: #{tpu_custom_call.1} parent=0 // pred_fallthru
    _
  %v61 = vld [vmem:[%s0] sm:$0xff]
  %v62 = vld [vmem:[%s0 + $0x8] sm:$0xff]
  %v63 = vld [vmem:[%s3] sm:$0xff]
  %v64 = vld [vmem:[%s3 + $0x8] sm:$0xff]
  %v65 = vld [vmem:[%s3 + $0x10] sm:$0xff]
  %v66 = vld [vmem:[%s3 + $0x18] sm:$0xff]
  %v67 = vld [vmem:[%s4] sm:$0x3]
  %v69 = vlaneseq
  %v70 = vshrl.u32 %v69, 7
  %v71 = vsub.s32 0, %v70
  %v72 = vrot.slane %v67, %v71
  %v73 = vlaneseq
  %v74 = vshrl.u32 %v73, 7
  %v75 = vsub.s32 1, %v74
  %v76 = vrot.slane %v67, %v75
  %vm79 = vcmask 130048
  %v81 = vsel %vm79, %v61, 0
  %v84 = vsel %vm79, %v62, 0
  %86 = vmatprep.subr.mxu0 0.0
  %87 = vmatpush1.msra.mxu0 0.0
  %88 = vmatprep.subr.mxu0 0.0
  %89 = vmatpush1.msra.mxu0 0.0
  %90 = vmatprep.subr.mxu0 0.0
  %91 = vmatpush1.msra.mxu0 0.0
  %92 = vmatprep.subr.mxu0 0.0
  %93 = vmatpush1.msra.mxu0 0.0
  %94 = vmatprep.subr.mxu0 0.0
  %95 = vmatpush1.msra.mxu0 0.0
  %96 = vmatprep.subr.mxu0 0.0
  %97 = vmatpush1.msra.mxu0 0.0
  %98 = vmatprep.subr.mxu0 0.0
  %99 = vmatpush1.msra.mxu0 0.0
  %100 = vmatprep.subr.mxu0 0.0
  %101 = vmatpush1.msra.mxu0 0.0
  %102 = vmatprep.subr.mxu0 0.0
  %103 = vmatpush1.msra.mxu0 0.0
  %104 = vmatprep.subr.mxu0 0.0
  %105 = vmatpush1.msra.mxu0 0.0
  %106 = vmatprep.subr.mxu0 0.0
  %107 = vmatpush1.msra.mxu0 0.0
  %108 = vmatprep.subr.mxu0 0.0
  %109 = vmatpush1.msra.mxu0 0.0
  %110 = vmatprep.subr.mxu0 0.0
  %111 = vmatpush1.msra.mxu0 0.0
  %112 = vmatprep.subr.mxu0 0.0
  %113 = vmatpush1.msra.mxu0 0.0
  %114 = vmatprep.subr.mxu0 %v66
  %115 = vmatpush1.msra.mxu0 %v65
  %116 = vmatprep.subr.mxu0 %v64
  %117 = vmatpush1.msra.mxu0 %v63
  %118 = vmatprep.subr.mxu0 0.0
  %119 = vmatpush2.msra.mxu0 0.0
  %120 = vmatprep.subr.mxu0 0.0
  %121 = vmatpush2.msra.mxu0 0.0
  %122 = vmatprep.subr.mxu0 0.0
  %123 = vmatpush2.msra.mxu0 0.0
  %124 = vmatprep.subr.mxu0 0.0
  %125 = vmatpush2.msra.mxu0 0.0
  %126 = vmatprep.subr.mxu0 0.0
  %127 = vmatpush2.msra.mxu0 0.0
  %128 = vmatprep.subr.mxu0 0.0
  %129 = vmatpush2.msra.mxu0 0.0
  %130 = vmatprep.subr.mxu0 0.0
  %131 = vmatpush2.msra.mxu0 0.0
  %132 = vmatprep.subr.mxu0 0.0
  %133 = vmatpush2.msra.mxu0 0.0
  %134 = vmatprep.subr.mxu0 0.0
  %135 = vmatpush2.msra.mxu0 0.0
  %136 = vmatprep.subr.mxu0 0.0
  %137 = vmatpush2.msra.mxu0 0.0
  %138 = vmatprep.subr.mxu0 0.0
  %139 = vmatpush2.msra.mxu0 0.0
  %140 = vmatprep.subr.mxu0 0.0
  %141 = vmatpush2.msra.mxu0 0.0
  %142 = vmatprep.subr.mxu0 0.0
  %143 = vmatpush2.msra.mxu0 0.0
  %144 = vmatprep.subr.mxu0 0.0
  %145 = vmatpush2.msra.mxu0 0.0
  %146 = vmatprep.subr.mxu0 0.0
  %147 = vmatpush2.msra.mxu0 0.0
  %148 = vmatprep.subr.mxu0 0.0
  %149 = vmatpush2.msra.mxu0 0.0
  %150 = vmatprep.mubr.f32.mxu0 0.0
  %151 = vmatmul.mubr.f32.gmra.mxu0 %v81
  %v152 = vpop.f32.mrf.mxu0
  %v153 = vadd.f32 %v72, %v152
  %v154 = vpop.f32.mrf.mxu0
  %v155 = vadd.f32 %v76, %v154
  %156 = vmatprep.mubr.f32.mxu0 0.0
  %157 = vmatmul.mubr.f32.gmra.mxu0 %v84
  %v158 = vpop.f32.mrf.mxu0
  %v159 = vadd.f32 %v72, %v158
  %v160 = vpop.f32.mrf.mxu0
  %v161 = vadd.f32 %v76, %v160
  %162 = vdwg.mxu0
  %v163 = vld [vmem:[%s5] sm:$0xff]
  %v164 = vld [vmem:[%s5 + $0x8] sm:$0xff]
  %v165 = vld [vmem:[%s5 + $0x10] sm:$0xff]
  %v166 = vld [vmem:[%s5 + $0x18] sm:$0xff]
  %v167 = vld [vmem:[%s5 + $0x20] sm:$0xff]
  %v168 = vld [vmem:[%s5 + $0x28] sm:$0xff]
  %v169 = vld [vmem:[%s5 + $0x30] sm:$0xff]
  %v170 = vld [vmem:[%s5 + $0x38] sm:$0xff]
  %v171 = vld [vmem:[%s5 + $0x40] sm:$0xff]
  %v172 = vld [vmem:[%s5 + $0x48] sm:$0xff]
  %v173 = vld [vmem:[%s5 + $0x50] sm:$0xff]
  %v174 = vld [vmem:[%s5 + $0x58] sm:$0xff]
  %v175 = vld [vmem:[%s5 + $0x60] sm:$0xff]
  %v176 = vld [vmem:[%s5 + $0x68] sm:$0xff]
  %v177 = vld [vmem:[%s5 + $0x70] sm:$0xff]
  %v178 = vld [vmem:[%s5 + $0x78] sm:$0xff]
  %v179 = vld [vmem:[%s1] sm:$0x3]
  %v180 = vld [vmem:[%s2] sm:$0x3]
  %vm181 = vcmask 523264
  %v183 = vsel %vm181, %v179, 0
  %185 = vmatprep.subr.mxu0 0.0
  %186 = vmatpush1.msra.mxu0 0.0
  %187 = vmatprep.subr.mxu0 0.0
  %188 = vmatpush1.msra.mxu0 0.0
  %189 = vmatprep.subr.mxu0 0.0
  %190 = vmatpush1.msra.mxu0 0.0
  %191 = vmatprep.subr.mxu0 0.0
  %192 = vmatpush1.msra.mxu0 0.0
  %193 = vmatprep.subr.mxu0 0.0
  %194 = vmatpush1.msra.mxu0 0.0
  %195 = vmatprep.subr.mxu0 0.0
  %196 = vmatpush1.msra.mxu0 0.0
  %197 = vmatprep.subr.mxu0 0.0
  %198 = vmatpush1.msra.mxu0 0.0
  %199 = vmatprep.subr.mxu0 0.0
  %200 = vmatpush1.msra.mxu0 0.0
  %201 = vmatprep.subr.mxu0 %v178
  %202 = vmatpush1.msra.mxu0 %v177
  %203 = vmatprep.subr.mxu0 %v176
  %204 = vmatpush1.msra.mxu0 %v175
  %205 = vmatprep.subr.mxu0 %v174
  %206 = vmatpush1.msra.mxu0 %v173
  %207 = vmatprep.subr.mxu0 %v172
  %208 = vmatpush1.msra.mxu0 %v171
  %209 = vmatprep.subr.mxu0 %v170
  %210 = vmatpush1.msra.mxu0 %v169
  %211 = vmatprep.subr.mxu0 %v168
  %212 = vmatpush1.msra.mxu0 %v167
  %213 = vmatprep.subr.mxu0 %v166
  %214 = vmatpush1.msra.mxu0 %v165
  %215 = vmatprep.subr.mxu0 %v164
  %216 = vmatpush1.msra.mxu0 %v163
  %217 = vmatprep.subr.mxu0 0.0
  %218 = vmatpush2.msra.mxu0 0.0
  %219 = vmatprep.subr.mxu0 0.0
  %220 = vmatpush2.msra.mxu0 0.0
  %221 = vmatprep.subr.mxu0 0.0
  %222 = vmatpush2.msra.mxu0 0.0
  %223 = vmatprep.subr.mxu0 0.0
  %224 = vmatpush2.msra.mxu0 0.0
  %225 = vmatprep.subr.mxu0 0.0
  %226 = vmatpush2.msra.mxu0 0.0
  %227 = vmatprep.subr.mxu0 0.0
  %228 = vmatpush2.msra.mxu0 0.0
  %229 = vmatprep.subr.mxu0 0.0
  %230 = vmatpush2.msra.mxu0 0.0
  %231 = vmatprep.subr.mxu0 0.0
  %232 = vmatpush2.msra.mxu0 0.0
  %233 = vmatprep.subr.mxu0 0.0
  %234 = vmatpush2.msra.mxu0 0.0
  %235 = vmatprep.subr.mxu0 0.0
  %236 = vmatpush2.msra.mxu0 0.0
  %237 = vmatprep.subr.mxu0 0.0
  %238 = vmatpush2.msra.mxu0 0.0
  %239 = vmatprep.subr.mxu0 0.0
  %240 = vmatpush2.msra.mxu0 0.0
  %241 = vmatprep.subr.mxu0 0.0
  %242 = vmatpush2.msra.mxu0 0.0
  %243 = vmatprep.subr.mxu0 0.0
  %244 = vmatpush2.msra.mxu0 0.0
  %245 = vmatprep.subr.mxu0 0.0
  %246 = vmatpush2.msra.mxu0 0.0
  %247 = vmatprep.subr.mxu0 0.0
  %248 = vmatpush2.msra.mxu0 0.0
  %249 = vmatprep.mubr.f32.mxu0 0.0
  %250 = vmatmul.mubr.f32.gmra.mxu0 %v183
  %v251 = vpop.f32.mrf.mxu0
  %v252 = vadd.f32 0.0, %v251
  %v253 = vpop.f32.mrf.mxu0
  %v254 = vadd.f32 0.0, %v253
  %255 = vdwg.mxu0
  %v256 = vadd.f32 %v153, %v252
  %v257 = vadd.f32 %v155, %v254
  %v258 = vxor.u32 %v256, 2147483648
  %v259 = vxor.u32 %v257, 2147483648
  %v260 = vmul.f32 %v258, 1.442695
  %v261 = vpow.pop %v260
  %v262 = vmul.f32 %v259, 1.442695
  %v263 = vpow.pop %v262
  %v264 = vadd.f32 %v261, 1.0
  %v265 = vadd.f32 %v263, 1.0
  %v266 = vrcp.pop %v264
  %v267 = vmul.f32 1.0, %v266
  %v268 = vrcp.pop %v265
  %v269 = vmul.f32 1.0, %v268
  %v270 = vtanh.pop %v257
  %272 = vrot.lane.b32.xlu0 %v180, 64
  %v273 = vpop.permute.xlu0 %272
  %v275 = vmul.f32 %v267, %v273
  %277 = vrot.lane.b32.xlu0 %v270, 64
  %v278 = vpop.permute.xlu0 %277
  %v280 = vmul.f32 %v267, %v278
  %282 = vrot.lane.b32.xlu0 %v280, 64
  %v283 = vpop.permute.xlu0 %282
  %v285 = vadd.f32 %v275, %v283
  %v286 = vtanh.pop %v285
  %288 = vrot.lane.b32.xlu0 %v286, 64
  %v289 = vpop.permute.xlu0 %288
  %v291 = vmul.f32 %v269, %v289
  %v293 = vsel %vm181, %v291, 0
  %295 = vmatprep.subr.mxu0 0.0
  %296 = vmatpush1.msra.mxu0 0.0
  %297 = vmatprep.subr.mxu0 0.0
  %298 = vmatpush1.msra.mxu0 0.0
  %299 = vmatprep.subr.mxu0 0.0
  %300 = vmatpush1.msra.mxu0 0.0
  %301 = vmatprep.subr.mxu0 0.0
  %302 = vmatpush1.msra.mxu0 0.0
  %303 = vmatprep.subr.mxu0 0.0
  %304 = vmatpush1.msra.mxu0 0.0
  %305 = vmatprep.subr.mxu0 0.0
  %306 = vmatpush1.msra.mxu0 0.0
  %307 = vmatprep.subr.mxu0 0.0
  %308 = vmatpush1.msra.mxu0 0.0
  %309 = vmatprep.subr.mxu0 0.0
  %310 = vmatpush1.msra.mxu0 0.0
  %311 = vmatprep.subr.mxu0 %v178
  %312 = vmatpush1.msra.mxu0 %v177
  %313 = vmatprep.subr.mxu0 %v176
  %314 = vmatpush1.msra.mxu0 %v175
  %315 = vmatprep.subr.mxu0 %v174
  %316 = vmatpush1.msra.mxu0 %v173
  %317 = vmatprep.subr.mxu0 %v172
  %318 = vmatpush1.msra.mxu0 %v171
  %319 = vmatprep.subr.mxu0 %v170
  %320 = vmatpush1.msra.mxu0 %v169
  %321 = vmatprep.subr.mxu0 %v168
  %322 = vmatpush1.msra.mxu0 %v167
  %323 = vmatprep.subr.mxu0 %v166
  %324 = vmatpush1.msra.mxu0 %v165
  %325 = vmatprep.subr.mxu0 %v164
  %326 = vmatpush1.msra.mxu0 %v163
  %327 = vmatprep.subr.mxu0 0.0
  %328 = vmatpush2.msra.mxu0 0.0
  %329 = vmatprep.subr.mxu0 0.0
  %330 = vmatpush2.msra.mxu0 0.0
  %331 = vmatprep.subr.mxu0 0.0
  %332 = vmatpush2.msra.mxu0 0.0
  %333 = vmatprep.subr.mxu0 0.0
  %334 = vmatpush2.msra.mxu0 0.0
  %335 = vmatprep.subr.mxu0 0.0
  %336 = vmatpush2.msra.mxu0 0.0
  %337 = vmatprep.subr.mxu0 0.0
  %338 = vmatpush2.msra.mxu0 0.0
  %339 = vmatprep.subr.mxu0 0.0
  %340 = vmatpush2.msra.mxu0 0.0
  %341 = vmatprep.subr.mxu0 0.0
  %342 = vmatpush2.msra.mxu0 0.0
  %343 = vmatprep.subr.mxu0 0.0
  %344 = vmatpush2.msra.mxu0 0.0
  %345 = vmatprep.subr.mxu0 0.0
  %346 = vmatpush2.msra.mxu0 0.0
  %347 = vmatprep.subr.mxu0 0.0
  %348 = vmatpush2.msra.mxu0 0.0
  %349 = vmatprep.subr.mxu0 0.0
  %350 = vmatpush2.msra.mxu0 0.0
  %351 = vmatprep.subr.mxu0 0.0
  %352 = vmatpush2.msra.mxu0 0.0
  %353 = vmatprep.subr.mxu0 0.0
  %354 = vmatpush2.msra.mxu0 0.0
  %355 = vmatprep.subr.mxu0 0.0
  %356 = vmatpush2.msra.mxu0 0.0
  %357 = vmatprep.subr.mxu0 0.0
  %358 = vmatpush2.msra.mxu0 0.0
  %359 = vmatprep.mubr.f32.mxu0 0.0
  %360 = vmatmul.mubr.f32.gmra.mxu0 %v293
  %v361 = vpop.f32.mrf.mxu0
  %v362 = vadd.f32 0.0, %v361
  %v363 = vpop.f32.mrf.mxu0
  %v364 = vadd.f32 0.0, %v363
  %365 = vdwg.mxu0
  %v368 = vrot.slane %v362, 6
  %v369 = vrot.slane %v364, 6
  %v372 = vadd.f32 %v153, %v368
  %v373 = vadd.f32 %v155, %v369
  %v374 = vxor.u32 %v372, 2147483648
  %v375 = vxor.u32 %v373, 2147483648
  %v376 = vmul.f32 %v374, 1.442695
  %v377 = vpow.pop %v376
  %v378 = vmul.f32 %v375, 1.442695
  %v379 = vpow.pop %v378
  %v380 = vadd.f32 %v377, 1.0
  %v381 = vadd.f32 %v379, 1.0
  %v382 = vrcp.pop %v380
  %v383 = vmul.f32 1.0, %v382
  %v384 = vrcp.pop %v381
  %v385 = vmul.f32 1.0, %v384
  %v386 = vtanh.pop %v373
  %v388 = vrot.slane %v285, 6
  %v390 = vmul.f32 %v383, %v388
  %392 = vrot.lane.b32.xlu0 %v386, 64
  %v393 = vpop.permute.xlu0 %392
  %v395 = vmul.f32 %v383, %v393
  %397 = vrot.lane.b32.xlu0 %v395, 64
  %v398 = vpop.permute.xlu0 %397
  %v400 = vadd.f32 %v390, %v398
  %v401 = vtanh.pop %v400
  %403 = vrot.lane.b32.xlu0 %v401, 64
  %v404 = vpop.permute.xlu0 %403
  %v406 = vmul.f32 %v385, %v404
  %v408 = vrot.slane %v406, 2
  %v409 = vsel %vm181, %v408, 0
  %411 = vmatprep.subr.mxu0 0.0
  %412 = vmatpush1.msra.mxu0 0.0
  %413 = vmatprep.subr.mxu0 0.0
  %414 = vmatpush1.msra.mxu0 0.0
  %415 = vmatprep.subr.mxu0 0.0
  %416 = vmatpush1.msra.mxu0 0.0
  %417 = vmatprep.subr.mxu0 0.0
  %418 = vmatpush1.msra.mxu0 0.0
  %419 = vmatprep.subr.mxu0 0.0
  %420 = vmatpush1.msra.mxu0 0.0
  %421 = vmatprep.subr.mxu0 0.0
  %422 = vmatpush1.msra.mxu0 0.0
  %423 = vmatprep.subr.mxu0 0.0
  %424 = vmatpush1.msra.mxu0 0.0
  %425 = vmatprep.subr.mxu0 0.0
  %426 = vmatpush1.msra.mxu0 0.0
  %427 = vmatprep.subr.mxu0 %v178
  %428 = vmatpush1.msra.mxu0 %v177
  %429 = vmatprep.subr.mxu0 %v176
  %430 = vmatpush1.msra.mxu0 %v175
  %431 = vmatprep.subr.mxu0 %v174
  %432 = vmatpush1.msra.mxu0 %v173
  %433 = vmatprep.subr.mxu0 %v172
  %434 = vmatpush1.msra.mxu0 %v171
  %435 = vmatprep.subr.mxu0 %v170
  %436 = vmatpush1.msra.mxu0 %v169
  %437 = vmatprep.subr.mxu0 %v168
  %438 = vmatpush1.msra.mxu0 %v167
  %439 = vmatprep.subr.mxu0 %v166
  %440 = vmatpush1.msra.mxu0 %v165
  %441 = vmatprep.subr.mxu0 %v164
  %442 = vmatpush1.msra.mxu0 %v163
  %443 = vmatprep.subr.mxu0 0.0
  %444 = vmatpush2.msra.mxu0 0.0
  %445 = vmatprep.subr.mxu0 0.0
  %446 = vmatpush2.msra.mxu0 0.0
  %447 = vmatprep.subr.mxu0 0.0
  %448 = vmatpush2.msra.mxu0 0.0
  %449 = vmatprep.subr.mxu0 0.0
  %450 = vmatpush2.msra.mxu0 0.0
  %451 = vmatprep.subr.mxu0 0.0
  %452 = vmatpush2.msra.mxu0 0.0
  %453 = vmatprep.subr.mxu0 0.0
  %454 = vmatpush2.msra.mxu0 0.0
  %455 = vmatprep.subr.mxu0 0.0
  %456 = vmatpush2.msra.mxu0 0.0
  %457 = vmatprep.subr.mxu0 0.0
  %458 = vmatpush2.msra.mxu0 0.0
  %459 = vmatprep.subr.mxu0 0.0
  %460 = vmatpush2.msra.mxu0 0.0
  %461 = vmatprep.subr.mxu0 0.0
  %462 = vmatpush2.msra.mxu0 0.0
  %463 = vmatprep.subr.mxu0 0.0
  %464 = vmatpush2.msra.mxu0 0.0
  %465 = vmatprep.subr.mxu0 0.0
  %466 = vmatpush2.msra.mxu0 0.0
  %467 = vmatprep.subr.mxu0 0.0
  %468 = vmatpush2.msra.mxu0 0.0
  %469 = vmatprep.subr.mxu0 0.0
  %470 = vmatpush2.msra.mxu0 0.0
  %471 = vmatprep.subr.mxu0 0.0
  %472 = vmatpush2.msra.mxu0 0.0
  %473 = vmatprep.subr.mxu0 0.0
  %474 = vmatpush2.msra.mxu0 0.0
  %475 = vmatprep.mubr.f32.mxu0 0.0
  %476 = vmatmul.mubr.f32.gmra.mxu0 %v409
  %v477 = vpop.f32.mrf.mxu0
  %v478 = vadd.f32 0.0, %v477
  %v479 = vpop.f32.mrf.mxu0
  %v480 = vadd.f32 0.0, %v479
  %481 = vdwg.mxu0
  %v484 = vrot.slane %v478, 4
  %v485 = vrot.slane %v480, 4
  %v488 = vadd.f32 %v153, %v484
  %v489 = vadd.f32 %v155, %v485
  %v490 = vxor.u32 %v488, 2147483648
  %v491 = vxor.u32 %v489, 2147483648
  %v492 = vmul.f32 %v490, 1.442695
  %v493 = vpow.pop %v492
  %v494 = vmul.f32 %v491, 1.442695
  %v495 = vpow.pop %v494
  %v496 = vadd.f32 %v493, 1.0
  %v497 = vadd.f32 %v495, 1.0
  %v498 = vrcp.pop %v496
  %v499 = vmul.f32 1.0, %v498
  %v500 = vrcp.pop %v497
  %v501 = vmul.f32 1.0, %v500
  %v502 = vtanh.pop %v489
  %v504 = vrot.slane %v400, 6
  %v506 = vmul.f32 %v499, %v504
  %508 = vrot.lane.b32.xlu0 %v502, 64
  %v509 = vpop.permute.xlu0 %508
  %v511 = vmul.f32 %v499, %v509
  %513 = vrot.lane.b32.xlu0 %v511, 64
  %v514 = vpop.permute.xlu0 %513
  %v516 = vadd.f32 %v506, %v514
  %v517 = vtanh.pop %v516
  %519 = vrot.lane.b32.xlu0 %v517, 64
  %v520 = vpop.permute.xlu0 %519
  %v522 = vmul.f32 %v501, %v520
  %v524 = vrot.slane %v522, 4
  %v525 = vsel %vm181, %v524, 0
  %527 = vmatprep.subr.mxu0 0.0
  %528 = vmatpush1.msra.mxu0 0.0
  %529 = vmatprep.subr.mxu0 0.0
  %530 = vmatpush1.msra.mxu0 0.0
  %531 = vmatprep.subr.mxu0 0.0
  %532 = vmatpush1.msra.mxu0 0.0
  %533 = vmatprep.subr.mxu0 0.0
  %534 = vmatpush1.msra.mxu0 0.0
  %535 = vmatprep.subr.mxu0 0.0
  %536 = vmatpush1.msra.mxu0 0.0
  %537 = vmatprep.subr.mxu0 0.0
  %538 = vmatpush1.msra.mxu0 0.0
  %539 = vmatprep.subr.mxu0 0.0
  %540 = vmatpush1.msra.mxu0 0.0
  %541 = vmatprep.subr.mxu0 0.0
  %542 = vmatpush1.msra.mxu0 0.0
  %543 = vmatprep.subr.mxu0 %v178
  %544 = vmatpush1.msra.mxu0 %v177
  %545 = vmatprep.subr.mxu0 %v176
  %546 = vmatpush1.msra.mxu0 %v175
  %547 = vmatprep.subr.mxu0 %v174
  %548 = vmatpush1.msra.mxu0 %v173
  %549 = vmatprep.subr.mxu0 %v172
  %550 = vmatpush1.msra.mxu0 %v171
  %551 = vmatprep.subr.mxu0 %v170
  %552 = vmatpush1.msra.mxu0 %v169
  %553 = vmatprep.subr.mxu0 %v168
  %554 = vmatpush1.msra.mxu0 %v167
  %555 = vmatprep.subr.mxu0 %v166
  %556 = vmatpush1.msra.mxu0 %v165
  %557 = vmatprep.subr.mxu0 %v164
  %558 = vmatpush1.msra.mxu0 %v163
  %559 = vmatprep.subr.mxu0 0.0
  %560 = vmatpush2.msra.mxu0 0.0
  %561 = vmatprep.subr.mxu0 0.0
  %562 = vmatpush2.msra.mxu0 0.0
  %563 = vmatprep.subr.mxu0 0.0
  %564 = vmatpush2.msra.mxu0 0.0
  %565 = vmatprep.subr.mxu0 0.0
  %566 = vmatpush2.msra.mxu0 0.0
  %567 = vmatprep.subr.mxu0 0.0
  %568 = vmatpush2.msra.mxu0 0.0
  %569 = vmatprep.subr.mxu0 0.0
  %570 = vmatpush2.msra.mxu0 0.0
  %571 = vmatprep.subr.mxu0 0.0
  %572 = vmatpush2.msra.mxu0 0.0
  %573 = vmatprep.subr.mxu0 0.0
  %574 = vmatpush2.msra.mxu0 0.0
  %575 = vmatprep.subr.mxu0 0.0
  %576 = vmatpush2.msra.mxu0 0.0
  %577 = vmatprep.subr.mxu0 0.0
  %578 = vmatpush2.msra.mxu0 0.0
  %579 = vmatprep.subr.mxu0 0.0
  %580 = vmatpush2.msra.mxu0 0.0
  %581 = vmatprep.subr.mxu0 0.0
  %582 = vmatpush2.msra.mxu0 0.0
  %583 = vmatprep.subr.mxu0 0.0
  %584 = vmatpush2.msra.mxu0 0.0
  %585 = vmatprep.subr.mxu0 0.0
  %586 = vmatpush2.msra.mxu0 0.0
  %587 = vmatprep.subr.mxu0 0.0
  %588 = vmatpush2.msra.mxu0 0.0
  %589 = vmatprep.subr.mxu0 0.0
  %590 = vmatpush2.msra.mxu0 0.0
  %591 = vmatprep.mubr.f32.mxu0 0.0
  %592 = vmatmul.mubr.f32.gmra.mxu0 %v525
  %v593 = vpop.f32.mrf.mxu0
  %v594 = vadd.f32 0.0, %v593
  %v595 = vpop.f32.mrf.mxu0
  %v596 = vadd.f32 0.0, %v595
  %597 = vdwg.mxu0
  %v600 = vrot.slane %v594, 2
  %v601 = vrot.slane %v596, 2
  %v604 = vadd.f32 %v153, %v600
  %v605 = vadd.f32 %v155, %v601
  %v606 = vxor.u32 %v604, 2147483648
  %v607 = vxor.u32 %v605, 2147483648
  %v608 = vmul.f32 %v606, 1.442695
  %v609 = vpow.pop %v608
  %v610 = vmul.f32 %v607, 1.442695
  %v611 = vpow.pop %v610
  %v612 = vadd.f32 %v609, 1.0
  %v613 = vadd.f32 %v611, 1.0
  %v614 = vrcp.pop %v612
  %v615 = vmul.f32 1.0, %v614
  %v616 = vrcp.pop %v613
  %v617 = vmul.f32 1.0, %v616
  %v618 = vtanh.pop %v605
  %v620 = vrot.slane %v516, 6
  %v622 = vmul.f32 %v615, %v620
  %624 = vrot.lane.b32.xlu0 %v618, 64
  %v625 = vpop.permute.xlu0 %624
  %v627 = vmul.f32 %v615, %v625
  %629 = vrot.lane.b32.xlu0 %v627, 64
  %v630 = vpop.permute.xlu0 %629
  %v632 = vadd.f32 %v622, %v630
  %v633 = vtanh.pop %v632
  %635 = vrot.lane.b32.xlu0 %v633, 64
  %v636 = vpop.permute.xlu0 %635
  %v638 = vmul.f32 %v617, %v636
  %v640 = vrot.slane %v638, 6
  %v641 = vsel %vm181, %v640, 0
  %643 = vmatprep.subr.mxu0 0.0
  %644 = vmatpush1.msra.mxu0 0.0
  %645 = vmatprep.subr.mxu0 0.0
  %646 = vmatpush1.msra.mxu0 0.0
  %647 = vmatprep.subr.mxu0 0.0
  %648 = vmatpush1.msra.mxu0 0.0
  %649 = vmatprep.subr.mxu0 0.0
  %650 = vmatpush1.msra.mxu0 0.0
  %651 = vmatprep.subr.mxu0 0.0
  %652 = vmatpush1.msra.mxu0 0.0
  %653 = vmatprep.subr.mxu0 0.0
  %654 = vmatpush1.msra.mxu0 0.0
  %655 = vmatprep.subr.mxu0 0.0
  %656 = vmatpush1.msra.mxu0 0.0
  %657 = vmatprep.subr.mxu0 0.0
  %658 = vmatpush1.msra.mxu0 0.0
  %659 = vmatprep.subr.mxu0 %v178
  %660 = vmatpush1.msra.mxu0 %v177
  %661 = vmatprep.subr.mxu0 %v176
  %662 = vmatpush1.msra.mxu0 %v175
  %663 = vmatprep.subr.mxu0 %v174
  %664 = vmatpush1.msra.mxu0 %v173
  %665 = vmatprep.subr.mxu0 %v172
  %666 = vmatpush1.msra.mxu0 %v171
  %667 = vmatprep.subr.mxu0 %v170
  %668 = vmatpush1.msra.mxu0 %v169
  %669 = vmatprep.subr.mxu0 %v168
  %670 = vmatpush1.msra.mxu0 %v167
  %671 = vmatprep.subr.mxu0 %v166
  %672 = vmatpush1.msra.mxu0 %v165
  %673 = vmatprep.subr.mxu0 %v164
  %674 = vmatpush1.msra.mxu0 %v163
  %675 = vmatprep.subr.mxu0 0.0
  %676 = vmatpush2.msra.mxu0 0.0
  %677 = vmatprep.subr.mxu0 0.0
  %678 = vmatpush2.msra.mxu0 0.0
  %679 = vmatprep.subr.mxu0 0.0
  %680 = vmatpush2.msra.mxu0 0.0
  %681 = vmatprep.subr.mxu0 0.0
  %682 = vmatpush2.msra.mxu0 0.0
  %683 = vmatprep.subr.mxu0 0.0
  %684 = vmatpush2.msra.mxu0 0.0
  %685 = vmatprep.subr.mxu0 0.0
  %686 = vmatpush2.msra.mxu0 0.0
  %687 = vmatprep.subr.mxu0 0.0
  %688 = vmatpush2.msra.mxu0 0.0
  %689 = vmatprep.subr.mxu0 0.0
  %690 = vmatpush2.msra.mxu0 0.0
  %691 = vmatprep.subr.mxu0 0.0
  %692 = vmatpush2.msra.mxu0 0.0
  %693 = vmatprep.subr.mxu0 0.0
  %694 = vmatpush2.msra.mxu0 0.0
  %695 = vmatprep.subr.mxu0 0.0
  %696 = vmatpush2.msra.mxu0 0.0
  %697 = vmatprep.subr.mxu0 0.0
  %698 = vmatpush2.msra.mxu0 0.0
  %699 = vmatprep.subr.mxu0 0.0
  %700 = vmatpush2.msra.mxu0 0.0
  %701 = vmatprep.subr.mxu0 0.0
  %702 = vmatpush2.msra.mxu0 0.0
  %703 = vmatprep.subr.mxu0 0.0
  %704 = vmatpush2.msra.mxu0 0.0
  %705 = vmatprep.subr.mxu0 0.0
  %706 = vmatpush2.msra.mxu0 0.0
  %707 = vmatprep.mubr.f32.mxu0 0.0
  %708 = vmatmul.mubr.f32.gmra.mxu0 %v641
  %v709 = vpop.f32.mrf.mxu0
  %v710 = vadd.f32 0.0, %v709
  %v711 = vpop.f32.mrf.mxu0
  %v712 = vadd.f32 0.0, %v711
  %713 = vdwg.mxu0
  %v714 = vadd.f32 %v159, %v710
  %v715 = vadd.f32 %v161, %v712
  %v716 = vxor.u32 %v714, 2147483648
  %v717 = vxor.u32 %v715, 2147483648
  %v718 = vmul.f32 %v716, 1.442695
  %v719 = vpow.pop %v718
  %v720 = vmul.f32 %v717, 1.442695
  %v721 = vpow.pop %v720
  %v722 = vadd.f32 %v719, 1.0
  %v723 = vadd.f32 %v721, 1.0
  %v724 = vrcp.pop %v722
  %v725 = vmul.f32 1.0, %v724
  %v726 = vrcp.pop %v723
  %v727 = vmul.f32 1.0, %v726
  %v728 = vtanh.pop %v715
  %v730 = vrot.slane %v632, 6
  %v732 = vmul.f32 %v725, %v730
  %734 = vrot.lane.b32.xlu0 %v728, 64
  %v735 = vpop.permute.xlu0 %734
  %v737 = vmul.f32 %v725, %v735
  %739 = vrot.lane.b32.xlu0 %v737, 64
  %v740 = vpop.permute.xlu0 %739
  %v742 = vadd.f32 %v732, %v740
  %v743 = vtanh.pop %v742
  %745 = vrot.lane.b32.xlu0 %v743, 64
  %v746 = vpop.permute.xlu0 %745
  %v748 = vmul.f32 %v727, %v746
  %v750 = vsel %vm181, %v748, 0
  %752 = vmatprep.subr.mxu0 0.0
  %753 = vmatpush1.msra.mxu0 0.0
  %754 = vmatprep.subr.mxu0 0.0
  %755 = vmatpush1.msra.mxu0 0.0
  %756 = vmatprep.subr.mxu0 0.0
  %757 = vmatpush1.msra.mxu0 0.0
  %758 = vmatprep.subr.mxu0 0.0
  %759 = vmatpush1.msra.mxu0 0.0
  %760 = vmatprep.subr.mxu0 0.0
  %761 = vmatpush1.msra.mxu0 0.0
  %762 = vmatprep.subr.mxu0 0.0
  %763 = vmatpush1.msra.mxu0 0.0
  %764 = vmatprep.subr.mxu0 0.0
  %765 = vmatpush1.msra.mxu0 0.0
  %766 = vmatprep.subr.mxu0 0.0
  %767 = vmatpush1.msra.mxu0 0.0
  %768 = vmatprep.subr.mxu0 %v178
  %769 = vmatpush1.msra.mxu0 %v177
  %770 = vmatprep.subr.mxu0 %v176
  %771 = vmatpush1.msra.mxu0 %v175
  %772 = vmatprep.subr.mxu0 %v174
  %773 = vmatpush1.msra.mxu0 %v173
  %774 = vmatprep.subr.mxu0 %v172
  %775 = vmatpush1.msra.mxu0 %v171
  %776 = vmatprep.subr.mxu0 %v170
  %777 = vmatpush1.msra.mxu0 %v169
  %778 = vmatprep.subr.mxu0 %v168
  %779 = vmatpush1.msra.mxu0 %v167
  %780 = vmatprep.subr.mxu0 %v166
  %781 = vmatpush1.msra.mxu0 %v165
  %782 = vmatprep.subr.mxu0 %v164
  %783 = vmatpush1.msra.mxu0 %v163
  %784 = vmatprep.subr.mxu0 0.0
  %785 = vmatpush2.msra.mxu0 0.0
  %786 = vmatprep.subr.mxu0 0.0
  %787 = vmatpush2.msra.mxu0 0.0
  %788 = vmatprep.subr.mxu0 0.0
  %789 = vmatpush2.msra.mxu0 0.0
  %790 = vmatprep.subr.mxu0 0.0
  %791 = vmatpush2.msra.mxu0 0.0
  %792 = vmatprep.subr.mxu0 0.0
  %793 = vmatpush2.msra.mxu0 0.0
  %794 = vmatprep.subr.mxu0 0.0
  %795 = vmatpush2.msra.mxu0 0.0
  %796 = vmatprep.subr.mxu0 0.0
  %797 = vmatpush2.msra.mxu0 0.0
  %798 = vmatprep.subr.mxu0 0.0
  %799 = vmatpush2.msra.mxu0 0.0
  %800 = vmatprep.subr.mxu0 0.0
  %801 = vmatpush2.msra.mxu0 0.0
  %802 = vmatprep.subr.mxu0 0.0
  %803 = vmatpush2.msra.mxu0 0.0
  %804 = vmatprep.subr.mxu0 0.0
  %805 = vmatpush2.msra.mxu0 0.0
  %806 = vmatprep.subr.mxu0 0.0
  %807 = vmatpush2.msra.mxu0 0.0
  %808 = vmatprep.subr.mxu0 0.0
  %809 = vmatpush2.msra.mxu0 0.0
  %810 = vmatprep.subr.mxu0 0.0
  %811 = vmatpush2.msra.mxu0 0.0
  %812 = vmatprep.subr.mxu0 0.0
  %813 = vmatpush2.msra.mxu0 0.0
  %814 = vmatprep.subr.mxu0 0.0
  %815 = vmatpush2.msra.mxu0 0.0
  %816 = vmatprep.mubr.f32.mxu0 0.0
  %817 = vmatmul.mubr.f32.gmra.mxu0 %v750
  %v818 = vpop.f32.mrf.mxu0
  %v819 = vadd.f32 0.0, %v818
  %v820 = vpop.f32.mrf.mxu0
  %v821 = vadd.f32 0.0, %v820
  %822 = vdwg.mxu0
  %v825 = vrot.slane %v819, 6
  %v826 = vrot.slane %v821, 6
  %v829 = vadd.f32 %v159, %v825
  %v830 = vadd.f32 %v161, %v826
  %v831 = vxor.u32 %v829, 2147483648
  %v832 = vxor.u32 %v830, 2147483648
  %v833 = vmul.f32 %v831, 1.442695
  %v834 = vpow.pop %v833
  %v835 = vmul.f32 %v832, 1.442695
  %v836 = vpow.pop %v835
  %v837 = vadd.f32 %v834, 1.0
  %v838 = vadd.f32 %v836, 1.0
  %v839 = vrcp.pop %v837
  %v840 = vmul.f32 1.0, %v839
  %v841 = vrcp.pop %v838
  %v842 = vmul.f32 1.0, %v841
  %v843 = vtanh.pop %v830
  %v845 = vrot.slane %v742, 6
  %v847 = vmul.f32 %v840, %v845
  %849 = vrot.lane.b32.xlu0 %v843, 64
  %v850 = vpop.permute.xlu0 %849
  %v852 = vmul.f32 %v840, %v850
  %854 = vrot.lane.b32.xlu0 %v852, 64
  %v855 = vpop.permute.xlu0 %854
  %v857 = vadd.f32 %v847, %v855
  %v858 = vtanh.pop %v857
  %860 = vrot.lane.b32.xlu0 %v858, 64
  %v861 = vpop.permute.xlu0 %860
  %v863 = vmul.f32 %v842, %v861
  %v865 = vrot.slane %v863, 2
  %v866 = vsel %vm181, %v865, 0
  %868 = vmatprep.subr.mxu0 0.0
  %869 = vmatpush1.msra.mxu0 0.0
  %870 = vmatprep.subr.mxu0 0.0
  %871 = vmatpush1.msra.mxu0 0.0
  %872 = vmatprep.subr.mxu0 0.0
  %873 = vmatpush1.msra.mxu0 0.0
  %874 = vmatprep.subr.mxu0 0.0
  %875 = vmatpush1.msra.mxu0 0.0
  %876 = vmatprep.subr.mxu0 0.0
  %877 = vmatpush1.msra.mxu0 0.0
  %878 = vmatprep.subr.mxu0 0.0
  %879 = vmatpush1.msra.mxu0 0.0
  %880 = vmatprep.subr.mxu0 0.0
  %881 = vmatpush1.msra.mxu0 0.0
  %882 = vmatprep.subr.mxu0 0.0
  %883 = vmatpush1.msra.mxu0 0.0
  %884 = vmatprep.subr.mxu0 %v178
  %885 = vmatpush1.msra.mxu0 %v177
  %886 = vmatprep.subr.mxu0 %v176
  %887 = vmatpush1.msra.mxu0 %v175
  %888 = vmatprep.subr.mxu0 %v174
  %889 = vmatpush1.msra.mxu0 %v173
  %890 = vmatprep.subr.mxu0 %v172
  %891 = vmatpush1.msra.mxu0 %v171
  %892 = vmatprep.subr.mxu0 %v170
  %893 = vmatpush1.msra.mxu0 %v169
  %894 = vmatprep.subr.mxu0 %v168
  %895 = vmatpush1.msra.mxu0 %v167
  %896 = vmatprep.subr.mxu0 %v166
  %897 = vmatpush1.msra.mxu0 %v165
  %898 = vmatprep.subr.mxu0 %v164
  %899 = vmatpush1.msra.mxu0 %v163
  %900 = vmatprep.subr.mxu0 0.0
  %901 = vmatpush2.msra.mxu0 0.0
  %902 = vmatprep.subr.mxu0 0.0
  %903 = vmatpush2.msra.mxu0 0.0
  %904 = vmatprep.subr.mxu0 0.0
  %905 = vmatpush2.msra.mxu0 0.0
  %906 = vmatprep.subr.mxu0 0.0
  %907 = vmatpush2.msra.mxu0 0.0
  %908 = vmatprep.subr.mxu0 0.0
  %909 = vmatpush2.msra.mxu0 0.0
  %910 = vmatprep.subr.mxu0 0.0
  %911 = vmatpush2.msra.mxu0 0.0
  %912 = vmatprep.subr.mxu0 0.0
  %913 = vmatpush2.msra.mxu0 0.0
  %914 = vmatprep.subr.mxu0 0.0
  %915 = vmatpush2.msra.mxu0 0.0
  %916 = vmatprep.subr.mxu0 0.0
  %917 = vmatpush2.msra.mxu0 0.0
  %918 = vmatprep.subr.mxu0 0.0
  %919 = vmatpush2.msra.mxu0 0.0
  %920 = vmatprep.subr.mxu0 0.0
  %921 = vmatpush2.msra.mxu0 0.0
  %922 = vmatprep.subr.mxu0 0.0
  %923 = vmatpush2.msra.mxu0 0.0
  %924 = vmatprep.subr.mxu0 0.0
  %925 = vmatpush2.msra.mxu0 0.0
  %926 = vmatprep.subr.mxu0 0.0
  %927 = vmatpush2.msra.mxu0 0.0
  %928 = vmatprep.subr.mxu0 0.0
  %929 = vmatpush2.msra.mxu0 0.0
  %930 = vmatprep.subr.mxu0 0.0
  %931 = vmatpush2.msra.mxu0 0.0
  %932 = vmatprep.mubr.f32.mxu0 0.0
  %933 = vmatmul.mubr.f32.gmra.mxu0 %v866
  %v934 = vpop.f32.mrf.mxu0
  %v935 = vadd.f32 0.0, %v934
  %v936 = vpop.f32.mrf.mxu0
  %v937 = vadd.f32 0.0, %v936
  %938 = vdwg.mxu0
  %v941 = vrot.slane %v935, 4
  %v942 = vrot.slane %v937, 4
  %v945 = vadd.f32 %v159, %v941
  %v946 = vadd.f32 %v161, %v942
  %v947 = vxor.u32 %v945, 2147483648
  %v948 = vxor.u32 %v946, 2147483648
  %v949 = vmul.f32 %v947, 1.442695
  %v950 = vpow.pop %v949
  %v951 = vmul.f32 %v948, 1.442695
  %v952 = vpow.pop %v951
  %v953 = vadd.f32 %v950, 1.0
  %v954 = vadd.f32 %v952, 1.0
  %v955 = vrcp.pop %v953
  %v956 = vmul.f32 1.0, %v955
  %v957 = vrcp.pop %v954
  %v958 = vmul.f32 1.0, %v957
  %v959 = vtanh.pop %v946
  %v961 = vrot.slane %v857, 6
  %v963 = vmul.f32 %v956, %v961
  %965 = vrot.lane.b32.xlu0 %v959, 64
  %v966 = vpop.permute.xlu0 %965
  %v968 = vmul.f32 %v956, %v966
  %970 = vrot.lane.b32.xlu0 %v968, 64
  %v971 = vpop.permute.xlu0 %970
  %v973 = vadd.f32 %v963, %v971
  %v974 = vtanh.pop %v973
  %976 = vrot.lane.b32.xlu0 %v974, 64
  %v977 = vpop.permute.xlu0 %976
  %v979 = vmul.f32 %v958, %v977
  %v981 = vrot.slane %v979, 4
  %v982 = vsel %vm181, %v981, 0
  %984 = vmatprep.subr.mxu0 0.0
  %985 = vmatpush1.msra.mxu0 0.0
  %986 = vmatprep.subr.mxu0 0.0
  %987 = vmatpush1.msra.mxu0 0.0
  %988 = vmatprep.subr.mxu0 0.0
  %989 = vmatpush1.msra.mxu0 0.0
  %990 = vmatprep.subr.mxu0 0.0
  %991 = vmatpush1.msra.mxu0 0.0
  %992 = vmatprep.subr.mxu0 0.0
  %993 = vmatpush1.msra.mxu0 0.0
  %994 = vmatprep.subr.mxu0 0.0
  %995 = vmatpush1.msra.mxu0 0.0
  %996 = vmatprep.subr.mxu0 0.0
  %997 = vmatpush1.msra.mxu0 0.0
  %998 = vmatprep.subr.mxu0 0.0
  %999 = vmatpush1.msra.mxu0 0.0
  %1000 = vmatprep.subr.mxu0 %v178
  %1001 = vmatpush1.msra.mxu0 %v177
  %1002 = vmatprep.subr.mxu0 %v176
  %1003 = vmatpush1.msra.mxu0 %v175
  %1004 = vmatprep.subr.mxu0 %v174
  %1005 = vmatpush1.msra.mxu0 %v173
  %1006 = vmatprep.subr.mxu0 %v172
  %1007 = vmatpush1.msra.mxu0 %v171
  %1008 = vmatprep.subr.mxu0 %v170
  %1009 = vmatpush1.msra.mxu0 %v169
  %1010 = vmatprep.subr.mxu0 %v168
  %1011 = vmatpush1.msra.mxu0 %v167
  %1012 = vmatprep.subr.mxu0 %v166
  %1013 = vmatpush1.msra.mxu0 %v165
  %1014 = vmatprep.subr.mxu0 %v164
  %1015 = vmatpush1.msra.mxu0 %v163
  %1016 = vmatprep.subr.mxu0 0.0
  %1017 = vmatpush2.msra.mxu0 0.0
  %1018 = vmatprep.subr.mxu0 0.0
  %1019 = vmatpush2.msra.mxu0 0.0
  %1020 = vmatprep.subr.mxu0 0.0
  %1021 = vmatpush2.msra.mxu0 0.0
  %1022 = vmatprep.subr.mxu0 0.0
  %1023 = vmatpush2.msra.mxu0 0.0
  %1024 = vmatprep.subr.mxu0 0.0
  %1025 = vmatpush2.msra.mxu0 0.0
  %1026 = vmatprep.subr.mxu0 0.0
  %1027 = vmatpush2.msra.mxu0 0.0
  %1028 = vmatprep.subr.mxu0 0.0
  %1029 = vmatpush2.msra.mxu0 0.0
  %1030 = vmatprep.subr.mxu0 0.0
  %1031 = vmatpush2.msra.mxu0 0.0
  %1032 = vmatprep.subr.mxu0 0.0
  %1033 = vmatpush2.msra.mxu0 0.0
  %1034 = vmatprep.subr.mxu0 0.0
  %1035 = vmatpush2.msra.mxu0 0.0
  %1036 = vmatprep.subr.mxu0 0.0
  %1037 = vmatpush2.msra.mxu0 0.0
  %1038 = vmatprep.subr.mxu0 0.0
  %1039 = vmatpush2.msra.mxu0 0.0
  %1040 = vmatprep.subr.mxu0 0.0
  %1041 = vmatpush2.msra.mxu0 0.0
  %1042 = vmatprep.subr.mxu0 0.0
  %1043 = vmatpush2.msra.mxu0 0.0
  %1044 = vmatprep.subr.mxu0 0.0
  %1045 = vmatpush2.msra.mxu0 0.0
  %1046 = vmatprep.subr.mxu0 0.0
  %1047 = vmatpush2.msra.mxu0 0.0
  %1048 = vmatprep.mubr.f32.mxu0 0.0
  %1049 = vmatmul.mubr.f32.gmra.mxu0 %v982
  %v1050 = vpop.f32.mrf.mxu0
  %v1051 = vadd.f32 0.0, %v1050
  %v1052 = vpop.f32.mrf.mxu0
  %v1053 = vadd.f32 0.0, %v1052
  %1054 = vdwg.mxu0
  %v1057 = vrot.slane %v1051, 2
  %v1058 = vrot.slane %v1053, 2
  %v1061 = vadd.f32 %v159, %v1057
  %v1062 = vadd.f32 %v161, %v1058
  %v1063 = vxor.u32 %v1061, 2147483648
  %v1064 = vxor.u32 %v1062, 2147483648
  %v1065 = vmul.f32 %v1063, 1.442695
  %v1066 = vpow.pop %v1065
  %v1067 = vmul.f32 %v1064, 1.442695
  %v1068 = vpow.pop %v1067
  %v1069 = vadd.f32 %v1066, 1.0
  %v1070 = vadd.f32 %v1068, 1.0
  %v1071 = vrcp.pop %v1069
  %v1072 = vmul.f32 1.0, %v1071
  %v1073 = vrcp.pop %v1070
  %v1074 = vmul.f32 1.0, %v1073
  %v1075 = vtanh.pop %v1062
  %v1077 = vrot.slane %v973, 6
  %v1079 = vmul.f32 %v1072, %v1077
  %1081 = vrot.lane.b32.xlu0 %v1075, 64
  %v1082 = vpop.permute.xlu0 %1081
  %v1084 = vmul.f32 %v1072, %v1082
  %1086 = vrot.lane.b32.xlu0 %v1084, 64
  %v1087 = vpop.permute.xlu0 %1086
  %v1089 = vadd.f32 %v1079, %v1087
  %v1090 = vtanh.pop %v1089
  %1092 = vrot.lane.b32.xlu0 %v1090, 64
  %v1093 = vpop.permute.xlu0 %1092
  %v1095 = vmul.f32 %v1074, %v1093
  %v1096 = vld [vmem:[%s6] sm:$0xff]
  %v1097 = vld [vmem:[%s6 + $0x8] sm:$0xff]
  %v1098 = vld [vmem:[%s6 + $0x10] sm:$0xff]
  %v1099 = vld [vmem:[%s6 + $0x18] sm:$0xff]
  %v1100 = vld [vmem:[%s6 + $0x20] sm:$0xff]
  %v1101 = vld [vmem:[%s6 + $0x28] sm:$0xff]
  %v1102 = vld [vmem:[%s6 + $0x30] sm:$0xff]
  %v1103 = vld [vmem:[%s6 + $0x38] sm:$0xff]
  %v1104 = vld [vmem:[%s7] sm:$0x1]
  %v1106 = vlaneseq
  %v1107 = vshrl.u32 %v1106, 7
  %v1108 = vsub.s32 0, %v1107
  %v1109 = vrot.slane %v1104, %v1108
  %v1112 = vrot.slane %v1095, 6
  %v1113 = vsel %vm181, %v1112, 0
  %1115 = vmatprep.subr.mxu0 0.0
  %1116 = vmatpush1.msra.mxu0 0.0
  %1117 = vmatprep.subr.mxu0 0.0
  %1118 = vmatpush1.msra.mxu0 0.0
  %1119 = vmatprep.subr.mxu0 0.0
  %1120 = vmatpush1.msra.mxu0 0.0
  %1121 = vmatprep.subr.mxu0 0.0
  %1122 = vmatpush1.msra.mxu0 0.0
  %1123 = vmatprep.subr.mxu0 0.0
  %1124 = vmatpush1.msra.mxu0 0.0
  %1125 = vmatprep.subr.mxu0 0.0
  %1126 = vmatpush1.msra.mxu0 0.0
  %1127 = vmatprep.subr.mxu0 0.0
  %1128 = vmatpush1.msra.mxu0 0.0
  %1129 = vmatprep.subr.mxu0 0.0
  %1130 = vmatpush1.msra.mxu0 0.0
  %1131 = vmatprep.subr.mxu0 0.0
  %1132 = vmatpush1.msra.mxu0 %v1103
  %1133 = vmatprep.subr.mxu0 0.0
  %1134 = vmatpush1.msra.mxu0 %v1102
  %1135 = vmatprep.subr.mxu0 0.0
  %1136 = vmatpush1.msra.mxu0 %v1101
  %1137 = vmatprep.subr.mxu0 0.0
  %1138 = vmatpush1.msra.mxu0 %v1100
  %1139 = vmatprep.subr.mxu0 0.0
  %1140 = vmatpush1.msra.mxu0 %v1099
  %1141 = vmatprep.subr.mxu0 0.0
  %1142 = vmatpush1.msra.mxu0 %v1098
  %1143 = vmatprep.subr.mxu0 0.0
  %1144 = vmatpush1.msra.mxu0 %v1097
  %1145 = vmatprep.subr.mxu0 0.0
  %1146 = vmatpush1.msra.mxu0 %v1096
  %1147 = vmatprep.subr.mxu0 0.0
  %1148 = vmatpush2.msra.mxu0 0.0
  %1149 = vmatprep.subr.mxu0 0.0
  %1150 = vmatpush2.msra.mxu0 0.0
  %1151 = vmatprep.subr.mxu0 0.0
  %1152 = vmatpush2.msra.mxu0 0.0
  %1153 = vmatprep.subr.mxu0 0.0
  %1154 = vmatpush2.msra.mxu0 0.0
  %1155 = vmatprep.subr.mxu0 0.0
  %1156 = vmatpush2.msra.mxu0 0.0
  %1157 = vmatprep.subr.mxu0 0.0
  %1158 = vmatpush2.msra.mxu0 0.0
  %1159 = vmatprep.subr.mxu0 0.0
  %1160 = vmatpush2.msra.mxu0 0.0
  %1161 = vmatprep.subr.mxu0 0.0
  %1162 = vmatpush2.msra.mxu0 0.0
  %1163 = vmatprep.subr.mxu0 0.0
  %1164 = vmatpush2.msra.mxu0 0.0
  %1165 = vmatprep.subr.mxu0 0.0
  %1166 = vmatpush2.msra.mxu0 0.0
  %1167 = vmatprep.subr.mxu0 0.0
  %1168 = vmatpush2.msra.mxu0 0.0
  %1169 = vmatprep.subr.mxu0 0.0
  %1170 = vmatpush2.msra.mxu0 0.0
  %1171 = vmatprep.subr.mxu0 0.0
  %1172 = vmatpush2.msra.mxu0 0.0
  %1173 = vmatprep.subr.mxu0 0.0
  %1174 = vmatpush2.msra.mxu0 0.0
  %1175 = vmatprep.subr.mxu0 0.0
  %1176 = vmatpush2.msra.mxu0 0.0
  %1177 = vmatprep.subr.mxu0 0.0
  %1178 = vmatpush2.msra.mxu0 0.0
  %1179 = vmatprep.mubr.f32.mxu0 0.0
  %1180 = vmatmul.mubr.f32.gmra.mxu0 %v1113
  %v1181 = vpop.f32.mrf.mxu0
  %v1182 = vadd.f32 %v1109, %v1181
  %v1183 = vpop.f32.mrf.mxu0
  %1184 = vdwg.mxu0
  %v1185 = vmax.f32 %v1182, 0.0
  %v1186 = vld [vmem:[%s8] sm:$0xff]
  %v1187 = vld [vmem:[%s8 + $0x8] sm:$0xff]
  %v1188 = vld [vmem:[%s8 + $0x10] sm:$0xff]
  %v1189 = vld [vmem:[%s8 + $0x18] sm:$0xff]
  %v1190 = vld [vmem:[%s9] sm:$0x1]
  %v1192 = vlaneseq
  %v1193 = vshrl.u32 %v1192, 7
  %v1194 = vsub.s32 0, %v1193
  %v1195 = vrot.slane %v1190, %v1194
  %vm1197 = vcmask 261120
  %v1199 = vsel %vm1197, %v1185, 0
  %1201 = vmatprep.subr.mxu0 0.0
  %1202 = vmatpush1.msra.mxu0 0.0
  %1203 = vmatprep.subr.mxu0 0.0
  %1204 = vmatpush1.msra.mxu0 0.0
  %1205 = vmatprep.subr.mxu0 0.0
  %1206 = vmatpush1.msra.mxu0 0.0
  %1207 = vmatprep.subr.mxu0 0.0
  %1208 = vmatpush1.msra.mxu0 0.0
  %1209 = vmatprep.subr.mxu0 0.0
  %1210 = vmatpush1.msra.mxu0 0.0
  %1211 = vmatprep.subr.mxu0 0.0
  %1212 = vmatpush1.msra.mxu0 0.0
  %1213 = vmatprep.subr.mxu0 0.0
  %1214 = vmatpush1.msra.mxu0 0.0
  %1215 = vmatprep.subr.mxu0 0.0
  %1216 = vmatpush1.msra.mxu0 0.0
  %1217 = vmatprep.subr.mxu0 0.0
  %1218 = vmatpush1.msra.mxu0 0.0
  %1219 = vmatprep.subr.mxu0 0.0
  %1220 = vmatpush1.msra.mxu0 0.0
  %1221 = vmatprep.subr.mxu0 0.0
  %1222 = vmatpush1.msra.mxu0 0.0
  %1223 = vmatprep.subr.mxu0 0.0
  %1224 = vmatpush1.msra.mxu0 0.0
  %1225 = vmatprep.subr.mxu0 0.0
  %1226 = vmatpush1.msra.mxu0 %v1189
  %1227 = vmatprep.subr.mxu0 0.0
  %1228 = vmatpush1.msra.mxu0 %v1188
  %1229 = vmatprep.subr.mxu0 0.0
  %1230 = vmatpush1.msra.mxu0 %v1187
  %1231 = vmatprep.subr.mxu0 0.0
  %1232 = vmatpush1.msra.mxu0 %v1186
  %1233 = vmatprep.subr.mxu0 0.0
  %1234 = vmatpush2.msra.mxu0 0.0
  %1235 = vmatprep.subr.mxu0 0.0
  %1236 = vmatpush2.msra.mxu0 0.0
  %1237 = vmatprep.subr.mxu0 0.0
  %1238 = vmatpush2.msra.mxu0 0.0
  %1239 = vmatprep.subr.mxu0 0.0
  %1240 = vmatpush2.msra.mxu0 0.0
  %1241 = vmatprep.subr.mxu0 0.0
  %1242 = vmatpush2.msra.mxu0 0.0
  %1243 = vmatprep.subr.mxu0 0.0
  %1244 = vmatpush2.msra.mxu0 0.0
  %1245 = vmatprep.subr.mxu0 0.0
  %1246 = vmatpush2.msra.mxu0 0.0
  %1247 = vmatprep.subr.mxu0 0.0
  %1248 = vmatpush2.msra.mxu0 0.0
  %1249 = vmatprep.subr.mxu0 0.0
  %1250 = vmatpush2.msra.mxu0 0.0
  %1251 = vmatprep.subr.mxu0 0.0
  %1252 = vmatpush2.msra.mxu0 0.0
  %1253 = vmatprep.subr.mxu0 0.0
  %1254 = vmatpush2.msra.mxu0 0.0
  %1255 = vmatprep.subr.mxu0 0.0
  %1256 = vmatpush2.msra.mxu0 0.0
  %1257 = vmatprep.subr.mxu0 0.0
  %1258 = vmatpush2.msra.mxu0 0.0
  %1259 = vmatprep.subr.mxu0 0.0
  %1260 = vmatpush2.msra.mxu0 0.0
  %1261 = vmatprep.subr.mxu0 0.0
  %1262 = vmatpush2.msra.mxu0 0.0
  %1263 = vmatprep.subr.mxu0 0.0
  %1264 = vmatpush2.msra.mxu0 0.0
  %1265 = vmatprep.mubr.f32.mxu0 0.0
  %1266 = vmatmul.mubr.f32.gmra.mxu0 %v1199
  %v1267 = vpop.f32.mrf.mxu0
  %v1268 = vadd.f32 %v1195, %v1267
  %v1269 = vpop.f32.mrf.mxu0
  %1270 = vdwg.mxu0
  %v1271 = vmax.f32 %v1268, 0.0
  %v1272 = vld [vmem:[%s10] sm:$0xff]
  %v1273 = vld [vmem:[%s10 + $0x8] sm:$0xff]
  %v1274 = vld [vmem:[%s10 + $0x10] sm:$0xff]
  %v1275 = vld [vmem:[%s10 + $0x18] sm:$0xff]
  %v1276 = vld [vmem:[%s10 + $0x20] sm:$0xff]
  %v1277 = vld [vmem:[%s10 + $0x28] sm:$0xff]
  %v1278 = vld [vmem:[%s10 + $0x30] sm:$0xff]
  %v1279 = vld [vmem:[%s10 + $0x38] sm:$0xff]
  %v1280 = vld [vmem:[%s10 + $0x40] sm:$0xff]
  %v1281 = vld [vmem:[%s10 + $0x48] sm:$0xff]
  %v1282 = vld [vmem:[%s10 + $0x50] sm:$0xff]
  %v1283 = vld [vmem:[%s10 + $0x58] sm:$0xff]
  %v1284 = vld [vmem:[%s10 + $0x60] sm:$0xff]
  %v1285 = vld [vmem:[%s10 + $0x68] sm:$0xff]
  %v1286 = vld [vmem:[%s10 + $0x70] sm:$0xff]
  %v1287 = vld [vmem:[%s10 + $0x78] sm:$0xff]
  %v1288 = vld [vmem:[%s11] sm:$0x1]
  %v1290 = vlaneseq
  %v1291 = vshrl.u32 %v1290, 7
  %v1292 = vsub.s32 0, %v1291
  %v1293 = vrot.slane %v1288, %v1292
  %1295 = vmatprep.subr.mxu0 0.0
  %1296 = vmatpush1.msra.mxu0 %v1287
  %1297 = vmatprep.subr.mxu0 0.0
  %1298 = vmatpush1.msra.mxu0 %v1286
  %1299 = vmatprep.subr.mxu0 0.0
  %1300 = vmatpush1.msra.mxu0 %v1285
  %1301 = vmatprep.subr.mxu0 0.0
  %1302 = vmatpush1.msra.mxu0 %v1284
  %1303 = vmatprep.subr.mxu0 0.0
  %1304 = vmatpush1.msra.mxu0 %v1283
  %1305 = vmatprep.subr.mxu0 0.0
  %1306 = vmatpush1.msra.mxu0 %v1282
  %1307 = vmatprep.subr.mxu0 0.0
  %1308 = vmatpush1.msra.mxu0 %v1281
  %1309 = vmatprep.subr.mxu0 0.0
  %1310 = vmatpush1.msra.mxu0 %v1280
  %1311 = vmatprep.subr.mxu0 0.0
  %1312 = vmatpush1.msra.mxu0 %v1279
  %1313 = vmatprep.subr.mxu0 0.0
  %1314 = vmatpush1.msra.mxu0 %v1278
  %1315 = vmatprep.subr.mxu0 0.0
  %1316 = vmatpush1.msra.mxu0 %v1277
  %1317 = vmatprep.subr.mxu0 0.0
  %1318 = vmatpush1.msra.mxu0 %v1276
  %1319 = vmatprep.subr.mxu0 0.0
  %1320 = vmatpush1.msra.mxu0 %v1275
  %1321 = vmatprep.subr.mxu0 0.0
  %1322 = vmatpush1.msra.mxu0 %v1274
  %1323 = vmatprep.subr.mxu0 0.0
  %1324 = vmatpush1.msra.mxu0 %v1273
  %1325 = vmatprep.subr.mxu0 0.0
  %1326 = vmatpush1.msra.mxu0 %v1272
  %1327 = vmatprep.subr.mxu0 0.0
  %1328 = vmatpush2.msra.mxu0 0.0
  %1329 = vmatprep.subr.mxu0 0.0
  %1330 = vmatpush2.msra.mxu0 0.0
  %1331 = vmatprep.subr.mxu0 0.0
  %1332 = vmatpush2.msra.mxu0 0.0
  %1333 = vmatprep.subr.mxu0 0.0
  %1334 = vmatpush2.msra.mxu0 0.0
  %1335 = vmatprep.subr.mxu0 0.0
  %1336 = vmatpush2.msra.mxu0 0.0
  %1337 = vmatprep.subr.mxu0 0.0
  %1338 = vmatpush2.msra.mxu0 0.0
  %1339 = vmatprep.subr.mxu0 0.0
  %1340 = vmatpush2.msra.mxu0 0.0
  %1341 = vmatprep.subr.mxu0 0.0
  %1342 = vmatpush2.msra.mxu0 0.0
  %1343 = vmatprep.subr.mxu0 0.0
  %1344 = vmatpush2.msra.mxu0 0.0
  %1345 = vmatprep.subr.mxu0 0.0
  %1346 = vmatpush2.msra.mxu0 0.0
  %1347 = vmatprep.subr.mxu0 0.0
  %1348 = vmatpush2.msra.mxu0 0.0
  %1349 = vmatprep.subr.mxu0 0.0
  %1350 = vmatpush2.msra.mxu0 0.0
  %1351 = vmatprep.subr.mxu0 0.0
  %1352 = vmatpush2.msra.mxu0 0.0
  %1353 = vmatprep.subr.mxu0 0.0
  %1354 = vmatpush2.msra.mxu0 0.0
  %1355 = vmatprep.subr.mxu0 0.0
  %1356 = vmatpush2.msra.mxu0 0.0
  %1357 = vmatprep.subr.mxu0 0.0
  %1358 = vmatpush2.msra.mxu0 0.0
  %1359 = vmatprep.mubr.f32.mxu0 0.0
  %1360 = vmatmul.mubr.f32.gmra.mxu0 %v1271
  %v1361 = vpop.f32.mrf.mxu0
  %v1362 = vadd.f32 %v1293, %v1361
  %v1363 = vpop.f32.mrf.mxu0
  %1364 = vdwg.mxu0
  %v1365 = vmax.f32 %v1362, 0.0
  %v1366 = vld [vmem:[%s12] sm:$0xff]
  %v1367 = vld [vmem:[%s12 + $0x8] sm:$0xff]
  %v1368 = vld [vmem:[%s12 + $0x10] sm:$0xff]
  %v1369 = vld [vmem:[%s12 + $0x18] sm:$0xff]
  %v1370 = vld [vmem:[%s12 + $0x20] sm:$0xff]
  %v1371 = vld [vmem:[%s12 + $0x28] sm:$0xff]
  %v1372 = vld [vmem:[%s12 + $0x30] sm:$0xff]
  %v1373 = vld [vmem:[%s12 + $0x38] sm:$0xff]
  %v1374 = vld [vmem:[%s13] sm:$0x1]
  %v1376 = vlaneseq
  %v1377 = vshrl.u32 %v1376, 7
  %v1378 = vsub.s32 0, %v1377
  %v1379 = vrot.slane %v1374, %v1378
  %v1382 = vsel %vm181, %v1365, 0
  %1384 = vmatprep.subr.mxu0 0.0
  %1385 = vmatpush1.msra.mxu0 0.0
  %1386 = vmatprep.subr.mxu0 0.0
  %1387 = vmatpush1.msra.mxu0 0.0
  %1388 = vmatprep.subr.mxu0 0.0
  %1389 = vmatpush1.msra.mxu0 0.0
  %1390 = vmatprep.subr.mxu0 0.0
  %1391 = vmatpush1.msra.mxu0 0.0
  %1392 = vmatprep.subr.mxu0 0.0
  %1393 = vmatpush1.msra.mxu0 0.0
  %1394 = vmatprep.subr.mxu0 0.0
  %1395 = vmatpush1.msra.mxu0 0.0
  %1396 = vmatprep.subr.mxu0 0.0
  %1397 = vmatpush1.msra.mxu0 0.0
  %1398 = vmatprep.subr.mxu0 0.0
  %1399 = vmatpush1.msra.mxu0 0.0
  %1400 = vmatprep.subr.mxu0 0.0
  %1401 = vmatpush1.msra.mxu0 %v1373
  %1402 = vmatprep.subr.mxu0 0.0
  %1403 = vmatpush1.msra.mxu0 %v1372
  %1404 = vmatprep.subr.mxu0 0.0
  %1405 = vmatpush1.msra.mxu0 %v1371
  %1406 = vmatprep.subr.mxu0 0.0
  %1407 = vmatpush1.msra.mxu0 %v1370
  %1408 = vmatprep.subr.mxu0 0.0
  %1409 = vmatpush1.msra.mxu0 %v1369
  %1410 = vmatprep.subr.mxu0 0.0
  %1411 = vmatpush1.msra.mxu0 %v1368
  %1412 = vmatprep.subr.mxu0 0.0
  %1413 = vmatpush1.msra.mxu0 %v1367
  %1414 = vmatprep.subr.mxu0 0.0
  %1415 = vmatpush1.msra.mxu0 %v1366
  %1416 = vmatprep.subr.mxu0 0.0
  %1417 = vmatpush2.msra.mxu0 0.0
  %1418 = vmatprep.subr.mxu0 0.0
  %1419 = vmatpush2.msra.mxu0 0.0
  %1420 = vmatprep.subr.mxu0 0.0
  %1421 = vmatpush2.msra.mxu0 0.0
  %1422 = vmatprep.subr.mxu0 0.0
  %1423 = vmatpush2.msra.mxu0 0.0
  %1424 = vmatprep.subr.mxu0 0.0
  %1425 = vmatpush2.msra.mxu0 0.0
  %1426 = vmatprep.subr.mxu0 0.0
  %1427 = vmatpush2.msra.mxu0 0.0
  %1428 = vmatprep.subr.mxu0 0.0
  %1429 = vmatpush2.msra.mxu0 0.0
  %1430 = vmatprep.subr.mxu0 0.0
  %1431 = vmatpush2.msra.mxu0 0.0
  %1432 = vmatprep.subr.mxu0 0.0
  %1433 = vmatpush2.msra.mxu0 0.0
  %1434 = vmatprep.subr.mxu0 0.0
  %1435 = vmatpush2.msra.mxu0 0.0
  %1436 = vmatprep.subr.mxu0 0.0
  %1437 = vmatpush2.msra.mxu0 0.0
  %1438 = vmatprep.subr.mxu0 0.0
  %1439 = vmatpush2.msra.mxu0 0.0
  %1440 = vmatprep.subr.mxu0 0.0
  %1441 = vmatpush2.msra.mxu0 0.0
  %1442 = vmatprep.subr.mxu0 0.0
  %1443 = vmatpush2.msra.mxu0 0.0
  %1444 = vmatprep.subr.mxu0 0.0
  %1445 = vmatpush2.msra.mxu0 0.0
  %1446 = vmatprep.subr.mxu0 0.0
  %1447 = vmatpush2.msra.mxu0 0.0
  %1448 = vmatprep.mubr.f32.mxu0 0.0
  %1449 = vmatmul.mubr.f32.gmra.mxu0 %v1382
  %v1450 = vpop.f32.mrf.mxu0
  %v1451 = vadd.f32 %v1379, %v1450
  %v1452 = vpop.f32.mrf.mxu0
  %1453 = vdwg.mxu0
  %v1454 = vmax.f32 %v1451, 0.0
  %v1455 = vld [vmem:[%s14] sm:$0xff]
  %v1456 = vld [vmem:[%s14 + $0x8] sm:$0xff]
  %v1457 = vld [vmem:[%s15] sm:$0x1]
  %v1459 = vlaneseq
  %v1460 = vshrl.u32 %v1459, 7
  %v1461 = vsub.s32 0, %v1460
  %v1462 = vrot.slane %v1457, %v1461
  %v1465 = vsel %vm79, %v1454, 0
  %1467 = vmatprep.subr.mxu0 0.0
  %1468 = vmatpush1.msra.mxu0 0.0
  %1469 = vmatprep.subr.mxu0 0.0
  %1470 = vmatpush1.msra.mxu0 0.0
  %1471 = vmatprep.subr.mxu0 0.0
  %1472 = vmatpush1.msra.mxu0 0.0
  %1473 = vmatprep.subr.mxu0 0.0
  %1474 = vmatpush1.msra.mxu0 0.0
  %1475 = vmatprep.subr.mxu0 0.0
  %1476 = vmatpush1.msra.mxu0 0.0
  %1477 = vmatprep.subr.mxu0 0.0
  %1478 = vmatpush1.msra.mxu0 0.0
  %1479 = vmatprep.subr.mxu0 0.0
  %1480 = vmatpush1.msra.mxu0 0.0
  %1481 = vmatprep.subr.mxu0 0.0
  %1482 = vmatpush1.msra.mxu0 0.0
  %1483 = vmatprep.subr.mxu0 0.0
  %1484 = vmatpush1.msra.mxu0 0.0
  %1485 = vmatprep.subr.mxu0 0.0
  %1486 = vmatpush1.msra.mxu0 0.0
  %1487 = vmatprep.subr.mxu0 0.0
  %1488 = vmatpush1.msra.mxu0 0.0
  %1489 = vmatprep.subr.mxu0 0.0
  %1490 = vmatpush1.msra.mxu0 0.0
  %1491 = vmatprep.subr.mxu0 0.0
  %1492 = vmatpush1.msra.mxu0 0.0
  %1493 = vmatprep.subr.mxu0 0.0
  %1494 = vmatpush1.msra.mxu0 0.0
  %1495 = vmatprep.subr.mxu0 0.0
  %1496 = vmatpush1.msra.mxu0 %v1456
  %1497 = vmatprep.subr.mxu0 0.0
  %1498 = vmatpush1.msra.mxu0 %v1455
  %1499 = vmatprep.subr.mxu0 0.0
  %1500 = vmatpush2.msra.mxu0 0.0
  %1501 = vmatprep.subr.mxu0 0.0
  %1502 = vmatpush2.msra.mxu0 0.0
  %1503 = vmatprep.subr.mxu0 0.0
  %1504 = vmatpush2.msra.mxu0 0.0
  %1505 = vmatprep.subr.mxu0 0.0
  %1506 = vmatpush2.msra.mxu0 0.0
  %1507 = vmatprep.subr.mxu0 0.0
  %1508 = vmatpush2.msra.mxu0 0.0
  %1509 = vmatprep.subr.mxu0 0.0
  %1510 = vmatpush2.msra.mxu0 0.0
  %1511 = vmatprep.subr.mxu0 0.0
  %1512 = vmatpush2.msra.mxu0 0.0
  %1513 = vmatprep.subr.mxu0 0.0
  %1514 = vmatpush2.msra.mxu0 0.0
  %1515 = vmatprep.subr.mxu0 0.0
  %1516 = vmatpush2.msra.mxu0 0.0
  %1517 = vmatprep.subr.mxu0 0.0
  %1518 = vmatpush2.msra.mxu0 0.0
  %1519 = vmatprep.subr.mxu0 0.0
  %1520 = vmatpush2.msra.mxu0 0.0
  %1521 = vmatprep.subr.mxu0 0.0
  %1522 = vmatpush2.msra.mxu0 0.0
  %1523 = vmatprep.subr.mxu0 0.0
  %1524 = vmatpush2.msra.mxu0 0.0
  %1525 = vmatprep.subr.mxu0 0.0
  %1526 = vmatpush2.msra.mxu0 0.0
  %1527 = vmatprep.subr.mxu0 0.0
  %1528 = vmatpush2.msra.mxu0 0.0
  %1529 = vmatprep.subr.mxu0 0.0
  %1530 = vmatpush2.msra.mxu0 0.0
  %1531 = vmatprep.mubr.f32.mxu0 0.0
  %1532 = vmatmul.mubr.f32.gmra.mxu0 %v1465
  %v1533 = vpop.f32.mrf.mxu0
  %v1534 = vadd.f32 %v1462, %v1533
  %v1535 = vpop.f32.mrf.mxu0
  %1536 = vdwg.mxu0
  %v1537 = vmax.f32 %v1534, 0.0
  %v1538 = vld [vmem:[%s16] sm:$0xf]
  %v1539 = vld [vmem:[#allocation2] sm:$0x1]
  %v1541 = vlaneseq
  %v1542 = vshrl.u32 %v1541, 7
  %v1543 = vsub.s32 0, %v1542
  %v1544 = vrot.slane %v1539, %v1543
  %vm1546 = vcmask 31744
  %v1548 = vsel %vm1546, %v1537, 0
  %vm1550 = vcmask 1043456
  %v1552 = vsel %vm1550, %v1538, 0
  %1554 = vmatprep.subr.mxu0 0.0
  %1555 = vmatpush1.msra.mxu0 0.0
  %1556 = vmatprep.subr.mxu0 0.0
  %1557 = vmatpush1.msra.mxu0 0.0
  %1558 = vmatprep.subr.mxu0 0.0
  %1559 = vmatpush1.msra.mxu0 0.0
  %1560 = vmatprep.subr.mxu0 0.0
  %1561 = vmatpush1.msra.mxu0 0.0
  %1562 = vmatprep.subr.mxu0 0.0
  %1563 = vmatpush1.msra.mxu0 0.0
  %1564 = vmatprep.subr.mxu0 0.0
  %1565 = vmatpush1.msra.mxu0 0.0
  %1566 = vmatprep.subr.mxu0 0.0
  %1567 = vmatpush1.msra.mxu0 0.0
  %1568 = vmatprep.subr.mxu0 0.0
  %1569 = vmatpush1.msra.mxu0 0.0
  %1570 = vmatprep.subr.mxu0 0.0
  %1571 = vmatpush1.msra.mxu0 0.0
  %1572 = vmatprep.subr.mxu0 0.0
  %1573 = vmatpush1.msra.mxu0 0.0
  %1574 = vmatprep.subr.mxu0 0.0
  %1575 = vmatpush1.msra.mxu0 0.0
  %1576 = vmatprep.subr.mxu0 0.0
  %1577 = vmatpush1.msra.mxu0 0.0
  %1578 = vmatprep.subr.mxu0 0.0
  %1579 = vmatpush1.msra.mxu0 0.0
  %1580 = vmatprep.subr.mxu0 0.0
  %1581 = vmatpush1.msra.mxu0 0.0
  %1582 = vmatprep.subr.mxu0 0.0
  %1583 = vmatpush1.msra.mxu0 0.0
  %1584 = vmatprep.subr.mxu0 0.0
  %1585 = vmatpush1.msra.mxu0 %v1552
  %1586 = vmatprep.subr.mxu0 0.0
  %1587 = vmatpush2.msra.mxu0 0.0
  %1588 = vmatprep.subr.mxu0 0.0
  %1589 = vmatpush2.msra.mxu0 0.0
  %1590 = vmatprep.subr.mxu0 0.0
  %1591 = vmatpush2.msra.mxu0 0.0
  %1592 = vmatprep.subr.mxu0 0.0
  %1593 = vmatpush2.msra.mxu0 0.0
  %1594 = vmatprep.subr.mxu0 0.0
  %1595 = vmatpush2.msra.mxu0 0.0
  %1596 = vmatprep.subr.mxu0 0.0
  %1597 = vmatpush2.msra.mxu0 0.0
  %1598 = vmatprep.subr.mxu0 0.0
  %1599 = vmatpush2.msra.mxu0 0.0
  %1600 = vmatprep.subr.mxu0 0.0
  %1601 = vmatpush2.msra.mxu0 0.0
  %1602 = vmatprep.subr.mxu0 0.0
  %1603 = vmatpush2.msra.mxu0 0.0
  %1604 = vmatprep.subr.mxu0 0.0
  %1605 = vmatpush2.msra.mxu0 0.0
  %1606 = vmatprep.subr.mxu0 0.0
  %1607 = vmatpush2.msra.mxu0 0.0
  %1608 = vmatprep.subr.mxu0 0.0
  %1609 = vmatpush2.msra.mxu0 0.0
  %1610 = vmatprep.subr.mxu0 0.0
  %1611 = vmatpush2.msra.mxu0 0.0
  %1612 = vmatprep.subr.mxu0 0.0
  %1613 = vmatpush2.msra.mxu0 0.0
  %1614 = vmatprep.subr.mxu0 0.0
  %1615 = vmatpush2.msra.mxu0 0.0
  %1616 = vmatprep.subr.mxu0 0.0
  %1617 = vmatpush2.msra.mxu0 0.0
  %1618 = vmatprep.mubr.f32.mxu0 0.0
  %1619 = vmatmul.mubr.f32.gmra.mxu0 %v1548
  %v1620 = vpop.f32.mrf.mxu0
  %v1621 = vadd.f32 %v1544, %v1620
  %v1622 = vpop.f32.mrf.mxu0
  %1623 = vdwg.mxu0
  %vm1624 = vcmask 1024
  %1625 = vst.msk [vmem:[%s18] sm:$0x3] %vm1624, %v1621
  // Predicated region
  $region74: #{tpu_custom_call.1} parent=0 // pred_check
    _
  $region75: #{tpu_custom_call.1} parent=0 // pred_check_branch
    %1627 = sbr.rel (0) target = $region77
  $region76: #{tpu_custom_call.1} parent=0 // pred_region
    _
  $region77: #{tpu_custom_call.1} parent=0 // pred_fallthru
    _
  // Predicated region
  $region78: #{tpu_custom_call.1} parent=0 // pred_check
    _
  $region79: #{tpu_custom_call.1} parent=0 // pred_check_branch
    %1629 = sbr.rel (0) target = $region81
  $region80: #{tpu_custom_call.1} parent=0 // pred_region
    _
  $region81: #{tpu_custom_call.1} parent=0 // pred_fallthru
    _

</llo_original>
